<compile_context>
chip_gen: v6e
topology: v6e:2x2x1
jax: 0.10.0
libtpu: 0.0.40
codegen_flags: <defaults>
</compile_context>

<pallas_src>
import jax
import jax.numpy as jnp
from jax import lax
from jax.experimental import pallas as pl
from jax.experimental.pallas import tpu as pltpu


# ----------------------------------------------------------------------------
# Kernel
# ----------------------------------------------------------------------------
def _make_kernel(tile_s, pack, n_reads, d1, d2, n_vh_layers, n_att_layers):
    L = d1 * d2

    def kernel(x_ref, *refs):
        o_ref = refs[-1]
        params = refs[:-1]
        vh = params[:2 * n_vh_layers]
        att = params[2 * n_vh_layers:2 * n_vh_layers + 2 * n_att_layers]

        # ---- fused attention_v / attention_h trunk ------------------------
        # Wrapper pre-fuses the two branches: [Wv | Wh] for layer 0,
        # blockdiag(Wv, Wh) for deeper layers.  The last layer is additionally
        # tiled d2x along its output so the gated features come out already
        # replicated for the pooling stage (replication rides on the MXU).
        h = x_ref[...].astype(jnp.float32)          # in-vreg upcast (bf16 ok)
        for li in range(n_vh_layers):
            w = vh[2 * li][...]
            b = vh[2 * li + 1][...]
            h = jnp.dot(h, w, preferred_element_type=jnp.float32) + b
            if li < n_vh_layers - 1:
                half = w.shape[1] // 2
                lane = lax.broadcasted_iota(jnp.int32, h.shape, 1)
                # v half -> ReLU (VPU), h half -> sigmoid (EUP); no lane moves.
                h = jnp.where(lane < half, jnp.maximum(h, 0.0),
                              jax.nn.sigmoid(h))
        # gated features, replicated d2x along lanes:
        #   g_t[:, k*d1 + j] == (a_v * a_h)[:, j]                  (rows, d2*d1)
        g_t = h[:, :L] * h[:, L:]

        # ---- inner attention MLP -> logits replicated d1x along lanes ------
        # First layer weight is zero-row-padded so it consumes g_t directly
        # (exact); the last layer weight repeats every output column d1 times:
        #   z[:, k*d1 + j] == logit[:, k]                          (rows, d2*d1)
        z = g_t
        for li in range(n_att_layers):
            w = att[2 * li][...]
            b = att[2 * li + 1][...]
            z = jnp.dot(z, w, preferred_element_type=jnp.float32) + b
            if li < n_att_layers - 1:
                z = jnp.maximum(z, 0.0)

        # ---- softmax over the R reads of each site + weighted pooling ------
        z3 = z.reshape(tile_s, n_reads, L)
        g3 = g_t.reshape(tile_s, n_reads, L)
        m = jnp.max(z3, axis=1, keepdims=True)
        e = jnp.exp(z3 - m)
        wgt = e / jnp.sum(e, axis=1, keepdims=True)        # softmax, replicated
        # out[s, k*d1+j] = sum_r softmax[s,r,k] * g[s,r,j]: one fused reduce.
        res = jnp.sum(wgt * g3, axis=1)                    # (tile_s, d2*d1)

        # ---- lane-dense store: pack `pack` consecutive sites per row -------
        if pack > 1:
            r3 = res.reshape(tile_s // pack, pack, L)
            res = jnp.concatenate([r3[:, q, :] for q in range(pack)], axis=-1)
        o_ref[...] = res.astype(o_ref.dtype)

    return kernel


# ----------------------------------------------------------------------------
# Parameter fusion (wrapper-side, tiny one-off XLA ops)
# ----------------------------------------------------------------------------
def _block_diag(a, b):
    m, n = a.shape
    p, q = b.shape
    out = jnp.zeros((m + p, n + q), jnp.float32)
    out = out.at[:m, :n].set(a)
    out = out.at[m:, n:].set(b)
    return out


def _fuse_vh_params(params_v, params_h, d2):
    assert len(params_v) == len(params_h) >= 2
    n = len(params_v)
    fused = []
    for i, ((wv, bv), (wh, bh)) in enumerate(zip(params_v, params_h)):
        wv = jnp.asarray(wv, jnp.float32)
        bv = jnp.asarray(bv, jnp.float32).reshape(-1)
        wh = jnp.asarray(wh, jnp.float32)
        bh = jnp.asarray(bh, jnp.float32).reshape(-1)
        assert wv.shape == wh.shape
        if i == n - 1:                      # replicate gated features d2x
            wv = jnp.tile(wv, (1, d2))
            bv = jnp.tile(bv, d2)
            wh = jnp.tile(wh, (1, d2))
            bh = jnp.tile(bh, d2)
        if i == 0:                          # shared input -> concat outputs
            w = jnp.concatenate([wv, wh], axis=1)
        else:                               # independent halves -> block diag
            w = _block_diag(wv, wh)
        b = jnp.concatenate([bv, bh])
        fused.append((w, b.reshape(1, -1)))
    return fused


def _fuse_att_params(params_a, d1, d2):
    assert len(params_a) >= 2
    L = d1 * d2
    n = len(params_a)
    fused = []
    for i, (w, b) in enumerate(params_a):
        w = jnp.asarray(w, jnp.float32)
        b = jnp.asarray(b, jnp.float32).reshape(-1)
        if i == 0:
            # input is the d2x-replicated g_t; only its first d1 lanes are used
            w = jnp.zeros((L, w.shape[1]), jnp.float32).at[:d1, :].set(w)
        if i == n - 1:
            # replicate every logit d1 times along lanes
            w = jnp.repeat(w, d1, axis=1)
            b = jnp.repeat(b, d1)
        fused.append((w, b.reshape(1, -1)))
    return fused


# ----------------------------------------------------------------------------
# Tiling
# ----------------------------------------------------------------------------
def _pick_tile_sites(n_sites, n_reads, channels, in_itemsize, out_lanes, pack,
                     target_bytes):
    """Largest site tile (multiple of 8*pack) whose lane-padded, double-buffered
    VMEM footprint (input blocks + ~5 live f32 intermediates + output blocks)
    stays within target_bytes, capped so the grid has >= 2 steps whenever the
    site count allows it.  Prefers low padding, then even step counts (v7x
    megacore balance), then the larger tile."""
    c_pad = ((channels + 127) // 128) * 128
    per_site = (n_reads * (2 * c_pad * in_itemsize      # 2x-buffered input rows
                           + 5 * 128 * 4)               # live lane-padded temps
                + 2 * out_lanes * 4)                    # 2x-buffered output row
    base = 8 * max(pack, 1)
    budget = max(base, (target_bytes // per_site) // base * base)
    half = max(base, (((n_sites + 1) // 2) + base - 1) // base * base)
    hi = min(budget, half)

    best_key, best_t = None, base
    t = hi
    for _ in range(128):
        if t < base:
            break
        steps = -(-n_sites // t)
        padding = steps * t - n_sites
        key = (padding, steps % 2, -t)
        if best_key is None or key < best_key:
            best_key, best_t = key, t
        t -= base
    return best_t


# ----------------------------------------------------------------------------
# Wrapper
# ----------------------------------------------------------------------------
def gated_attention_forward(x, params_v, params_h, params_a, n_reads_per_site,
                            tile_sites=None):
    """x: (N, C) flat read batch (like PyTorch). params_*: list of (W, b) with
    W in (in, out) layout (= torch nn.Linear weight transposed).
    Returns (N // n_reads_per_site, d2 * d1) in float32."""
    N, C = x.shape
    R = n_reads_per_site
    assert N % R == 0, "batch must be a multiple of n_reads_per_site"
    S = N // R
    d1 = params_v[-1][0].shape[1]
    assert params_h[-1][0].shape[1] == d1
    assert params_a[0][0].shape[0] == d1
    d2 = params_a[-1][0].shape[1]
    L = d1 * d2

    # Lane-dense output: pack P consecutive sites per HBM row so the kernel
    # issues full-width unmasked stores and a dense writeback DMA.
    P = 128 // L if (L <= 128 and 128 % L == 0) else 1

    # Per-generation VMEM budget (v7x has only 64 MiB per TensorCore).
    try:
        vmem_cap = int(pltpu.get_tpu_info().vmem_capacity_bytes)
    except Exception:                   # conservative: smallest current gen
        vmem_cap = 64 * 1024 * 1024
    vmem_limit = min(vmem_cap * 3 // 4, 96 * 1024 * 1024)

    if tile_sites is None:
        tile_sites = _pick_tile_sites(S, R, C, jnp.dtype(x.dtype).itemsize,
                                      L, P, target_bytes=vmem_limit // 3)
    base = 8 * P
    tile_sites = max(base, (tile_sites + base - 1) // base * base)

    steps = -(-S // tile_sites)
    s_pad = steps * tile_sites
    if s_pad != S:                      # pad awkward site counts, slice later
        x = jnp.pad(x, ((0, (s_pad - S) * R), (0, 0)))

    fused_vh = _fuse_vh_params(params_v, params_h, d2)
    fused_a = _fuse_att_params(params_a, d1, d2)
    flat_params = []
    for (w, b) in (*fused_vh, *fused_a):
        flat_params.append(w)
        flat_params.append(b)

    kernel = _make_kernel(tile_sites, P, R, d1, d2, len(fused_vh), len(fused_a))

    in_specs = [pl.BlockSpec((tile_sites * R, C), lambda i: (i, 0))]
    # Tiny fused params stay resident across the grid (constant index maps).
    in_specs += [pl.BlockSpec(p.shape, lambda i: (0, 0)) for p in flat_params]
    out_spec = pl.BlockSpec((tile_sites // P, P * L), lambda i: (i, 0))

    out = pl.pallas_call(
        kernel,
        out_shape=jax.ShapeDtypeStruct((s_pad // P, P * L), jnp.float32),
        grid_spec=pltpu.PrefetchScalarGridSpec(
            num_scalar_prefetch=0,
            grid=(steps,),
            in_specs=in_specs,
            out_specs=out_spec,
        ),
        compiler_params=pltpu.CompilerParams(
            dimension_semantics=("parallel",),    # megacore split on v7x
            vmem_limit_bytes=int(vmem_limit),
        ),
    )(x, *flat_params)

    # Free row-major unpack of the lane-dense rows + drop padded sites.
    return out.reshape(s_pad, L)[:S]


# ----------------------------------------------------------------------------
# Demo + reference check
# ----------------------------------------------------------------------------
if __name__ == "__main__":
    # Small shapes consistent with the module (hidden_layers_* need >= 2
    # entries to match the PyTorch _create_attention_layers construction).
    input_channel = 32
    hidden_layers_1 = (16, 8)     # attention_v / attention_h widths; d1 = 8
    hidden_layers_2 = (8, 4)      # inner Attention widths;           d2 = 4
    n_reads_per_site = 8
    n_sites = 60                  # not a tile multiple -> exercises padding
    N = n_sites * n_reads_per_site

    key = jax.random.PRNGKey(0)

    def init_mlp(key, in_dim, widths):
        # PyTorch-style uniform(-1/sqrt(fan_in), 1/sqrt(fan_in)); weights as
        # (in, out) = torch weight.T.
        layers = []
        for out_dim in widths:
            key, kw, kb = jax.random.split(key, 3)
            bound = 1.0 / (in_dim ** 0.5)
            W = jax.random.uniform(kw, (in_dim, out_dim), minval=-bound,
                                   maxval=bound, dtype=jnp.float32)
            b = jax.random.uniform(kb, (out_dim,), minval=-bound,
                                   maxval=bound, dtype=jnp.float32)
            layers.append((W, b))
            in_dim = out_dim
        return key, layers

    key, params_v = init_mlp(key, input_channel, hidden_layers_1)
    key, params_h = init_mlp(key, input_channel, hidden_layers_1)
    key, params_a = init_mlp(key, hidden_layers_1[-1], hidden_layers_2)
    key, kx = jax.random.split(key)
    x = jax.random.normal(kx, (N, input_channel), dtype=jnp.float32)

    out = jax.block_until_ready(
        gated_attention_forward(x, params_v, params_h, params_a,
                                n_reads_per_site))

    # Plain-JAX reference of the exact PyTorch forward.
    def mlp_ref(h, layers, act):
        for i, (W, b) in enumerate(layers):
            h = h @ W + b
            if i < len(layers) - 1:
                h = act(h)
        return h

    a_v = mlp_ref(x, params_v, jax.nn.relu)
    a_h = mlp_ref(x, params_h, jax.nn.sigmoid)
    g = a_v * a_h
    logits = mlp_ref(g, params_a, jax.nn.relu)
    d1, d2 = hidden_layers_1[-1], hidden_layers_2[-1]
    Wt = jnp.transpose(logits.reshape(n_sites, n_reads_per_site, d2), (0, 2, 1))
    Wt = jax.nn.softmax(Wt, axis=-1)
    M = jnp.matmul(Wt, g.reshape(n_sites, n_reads_per_site, d1))
    ref = M.reshape(n_sites, d2 * d1)

    assert out.shape == ref.shape
    # Tolerance accounts for MXU accumulation-order differences between the
    # XLA reference and the Mosaic kernel.
    assert jnp.allclose(out, ref, atol=5e-3, rtol=5e-3), \
        float(jnp.max(jnp.abs(out - ref)))
    print("KERNEL_OK")
</pallas_src>

<mosaic_0001>
module attributes {stable_mosaic.version = 11 : i64} {
  func.func @kernel(%arg0: i32, %arg1: memref<256x32xf32, #tpu.memory_space<vmem>>, %arg2: memref<32x32xf32, #tpu.memory_space<vmem>>, %arg3: memref<1x32xf32, #tpu.memory_space<vmem>>, %arg4: memref<32x64xf32, #tpu.memory_space<vmem>>, %arg5: memref<1x64xf32, #tpu.memory_space<vmem>>, %arg6: memref<32x8xf32, #tpu.memory_space<vmem>>, %arg7: memref<1x8xf32, #tpu.memory_space<vmem>>, %arg8: memref<8x32xf32, #tpu.memory_space<vmem>>, %arg9: memref<1x32xf32, #tpu.memory_space<vmem>>, %arg10: memref<8x128xf32, #tpu.memory_space<vmem>>) attributes {dimension_semantics = [#tpu.dimension_semantics<parallel>], iteration_bounds = array<i64: 2>, scalar_prefetch = 0 : i64, scratch_operands = 0 : i64, tpu.core_type = #tpu.core_type<tc>, window_params = [{transform_indices = @transform_0, window_bounds = array<i64: 256, 32>}, {pipeline_mode = #tpu.pipeline_mode<synchronous>, transform_indices = @transform_1, window_bounds = array<i64: 32, 32>}, {pipeline_mode = #tpu.pipeline_mode<synchronous>, transform_indices = @transform_2, window_bounds = array<i64: 1, 32>}, {pipeline_mode = #tpu.pipeline_mode<synchronous>, transform_indices = @transform_3, window_bounds = array<i64: 32, 64>}, {pipeline_mode = #tpu.pipeline_mode<synchronous>, transform_indices = @transform_4, window_bounds = array<i64: 1, 64>}, {pipeline_mode = #tpu.pipeline_mode<synchronous>, transform_indices = @transform_5, window_bounds = array<i64: 32, 8>}, {pipeline_mode = #tpu.pipeline_mode<synchronous>, transform_indices = @transform_6, window_bounds = array<i64: 1, 8>}, {pipeline_mode = #tpu.pipeline_mode<synchronous>, transform_indices = @transform_7, window_bounds = array<i64: 8, 32>}, {pipeline_mode = #tpu.pipeline_mode<synchronous>, transform_indices = @transform_8, window_bounds = array<i64: 1, 32>}, {transform_indices = @transform_9, window_bounds = array<i64: 8, 128>}]} {
    %c0 = arith.constant 0 : index
    %c0_0 = arith.constant 0 : index
    %0 = vector.load %arg1[%c0, %c0_0] : memref<256x32xf32, #tpu.memory_space<vmem>>, vector<256x32xf32>
    %c0_1 = arith.constant 0 : index
    %c0_2 = arith.constant 0 : index
    %1 = vector.load %arg2[%c0_1, %c0_2] : memref<32x32xf32, #tpu.memory_space<vmem>>, vector<32x32xf32>
    %c0_3 = arith.constant 0 : index
    %c0_4 = arith.constant 0 : index
    %2 = vector.load %arg3[%c0_3, %c0_4] : memref<1x32xf32, #tpu.memory_space<vmem>>, vector<1x32xf32>
    %cst = arith.constant dense<0.000000e+00> : vector<256x32xf32>
    %3 = tpu.matmul %0, %1, %cst {dimension_numbers = #tpu.dot_dimension_numbers<[1], [0], [0], [1], [0, 0, 1, 1], [], []>} : vector<256x32xf32>, vector<32x32xf32>, vector<256x32xf32> -> vector<256x32xf32>
    %4 = vector.broadcast %2 : vector<1x32xf32> to vector<256x32xf32>
    %5 = arith.addf %3, %4 : vector<256x32xf32>
    %6 = tpu.iota {dimensions = array<i32: 1>} : vector<256x32xi32>
    %c16_i32 = arith.constant 16 : i32
    %7 = vector.broadcast %c16_i32 : i32 to vector<256x32xi32>
    %8 = arith.cmpi slt, %6, %7 : vector<256x32xi32>
    %cst_5 = arith.constant 0.000000e+00 : f32
    %9 = vector.broadcast %cst_5 : f32 to vector<256x32xf32>
    %10 = arith.maximumf %5, %9 : vector<256x32xf32>
    %11 = arith.negf %5 : vector<256x32xf32>
    %12 = math.exp %11 : vector<256x32xf32>
    %cst_6 = arith.constant 1.000000e+00 : f32
    %13 = vector.broadcast %cst_6 : f32 to vector<256x32xf32>
    %14 = arith.addf %13, %12 : vector<256x32xf32>
    %15 = arith.divf %13, %14 : vector<256x32xf32>
    %16 = arith.select %8, %10, %15 : vector<256x32xi1>, vector<256x32xf32>
    %c0_7 = arith.constant 0 : index
    %c0_8 = arith.constant 0 : index
    %17 = vector.load %arg4[%c0_7, %c0_8] : memref<32x64xf32, #tpu.memory_space<vmem>>, vector<32x64xf32>
    %c0_9 = arith.constant 0 : index
    %c0_10 = arith.constant 0 : index
    %18 = vector.load %arg5[%c0_9, %c0_10] : memref<1x64xf32, #tpu.memory_space<vmem>>, vector<1x64xf32>
    %cst_11 = arith.constant dense<0.000000e+00> : vector<256x64xf32>
    %19 = tpu.matmul %16, %17, %cst_11 {dimension_numbers = #tpu.dot_dimension_numbers<[1], [0], [0], [1], [0, 0, 1, 1], [], []>} : vector<256x32xf32>, vector<32x64xf32>, vector<256x64xf32> -> vector<256x64xf32>
    %20 = vector.broadcast %18 : vector<1x64xf32> to vector<256x64xf32>
    %21 = arith.addf %19, %20 : vector<256x64xf32>
    %22 = vector.extract_strided_slice %21 {offsets = [0, 0], sizes = [256, 32], strides = [1, 1]} : vector<256x64xf32> to vector<256x32xf32>
    %23 = vector.extract_strided_slice %21 {offsets = [0, 32], sizes = [256, 32], strides = [1, 1]} : vector<256x64xf32> to vector<256x32xf32>
    %24 = arith.mulf %22, %23 : vector<256x32xf32>
    %c0_12 = arith.constant 0 : index
    %c0_13 = arith.constant 0 : index
    %25 = vector.load %arg6[%c0_12, %c0_13] : memref<32x8xf32, #tpu.memory_space<vmem>>, vector<32x8xf32>
    %c0_14 = arith.constant 0 : index
    %c0_15 = arith.constant 0 : index
    %26 = vector.load %arg7[%c0_14, %c0_15] : memref<1x8xf32, #tpu.memory_space<vmem>>, vector<1x8xf32>
    %cst_16 = arith.constant dense<0.000000e+00> : vector<256x8xf32>
    %27 = tpu.matmul %24, %25, %cst_16 {dimension_numbers = #tpu.dot_dimension_numbers<[1], [0], [0], [1], [0, 0, 1, 1], [], []>} : vector<256x32xf32>, vector<32x8xf32>, vector<256x8xf32> -> vector<256x8xf32>
    %28 = vector.broadcast %26 : vector<1x8xf32> to vector<256x8xf32>
    %29 = arith.addf %27, %28 : vector<256x8xf32>
    %cst_17 = arith.constant 0.000000e+00 : f32
    %30 = vector.broadcast %cst_17 : f32 to vector<256x8xf32>
    %31 = arith.maximumf %29, %30 : vector<256x8xf32>
    %c0_18 = arith.constant 0 : index
    %c0_19 = arith.constant 0 : index
    %32 = vector.load %arg8[%c0_18, %c0_19] : memref<8x32xf32, #tpu.memory_space<vmem>>, vector<8x32xf32>
    %c0_20 = arith.constant 0 : index
    %c0_21 = arith.constant 0 : index
    %33 = vector.load %arg9[%c0_20, %c0_21] : memref<1x32xf32, #tpu.memory_space<vmem>>, vector<1x32xf32>
    %cst_22 = arith.constant dense<0.000000e+00> : vector<256x32xf32>
    %34 = tpu.matmul %31, %32, %cst_22 {dimension_numbers = #tpu.dot_dimension_numbers<[1], [0], [0], [1], [0, 0, 1, 1], [], []>} : vector<256x8xf32>, vector<8x32xf32>, vector<256x32xf32> -> vector<256x32xf32>
    %35 = vector.broadcast %33 : vector<1x32xf32> to vector<256x32xf32>
    %36 = arith.addf %34, %35 : vector<256x32xf32>
    %37 = vector.shape_cast %36 : vector<256x32xf32> to vector<32x8x32xf32>
    %38 = vector.shape_cast %24 : vector<256x32xf32> to vector<32x8x32xf32>
    %cst_23 = arith.constant dense<0xFF800000> : vector<32x32xf32>
    %39 = vector.multi_reduction <maximumf>, %37, %cst_23 [1] : vector<32x8x32xf32> to vector<32x32xf32>
    %40 = vector.shape_cast %39 : vector<32x32xf32> to vector<32x1x32xf32>
    %41 = vector.broadcast %40 : vector<32x1x32xf32> to vector<32x8x32xf32>
    %42 = arith.subf %37, %41 : vector<32x8x32xf32>
    %43 = math.exp %42 : vector<32x8x32xf32>
    %cst_24 = arith.constant dense<0.000000e+00> : vector<32x32xf32>
    %44 = vector.multi_reduction <add>, %43, %cst_24 [1] : vector<32x8x32xf32> to vector<32x32xf32>
    %45 = vector.shape_cast %44 : vector<32x32xf32> to vector<32x1x32xf32>
    %46 = vector.broadcast %45 : vector<32x1x32xf32> to vector<32x8x32xf32>
    %47 = arith.divf %43, %46 : vector<32x8x32xf32>
    %48 = arith.mulf %47, %38 : vector<32x8x32xf32>
    %cst_25 = arith.constant dense<0.000000e+00> : vector<32x32xf32>
    %49 = vector.multi_reduction <add>, %48, %cst_25 [1] : vector<32x8x32xf32> to vector<32x32xf32>
    %50 = vector.shape_cast %49 : vector<32x32xf32> to vector<8x4x32xf32>
    %51 = vector.extract_strided_slice %50 {offsets = [0, 0, 0], sizes = [8, 1, 32], strides = [1, 1, 1]} : vector<8x4x32xf32> to vector<8x1x32xf32>
    %52 = vector.shape_cast %51 : vector<8x1x32xf32> to vector<8x32xf32>
    %53 = vector.extract_strided_slice %50 {offsets = [0, 1, 0], sizes = [8, 1, 32], strides = [1, 1, 1]} : vector<8x4x32xf32> to vector<8x1x32xf32>
    %54 = vector.shape_cast %53 : vector<8x1x32xf32> to vector<8x32xf32>
    %55 = vector.extract_strided_slice %50 {offsets = [0, 2, 0], sizes = [8, 1, 32], strides = [1, 1, 1]} : vector<8x4x32xf32> to vector<8x1x32xf32>
    %56 = vector.shape_cast %55 : vector<8x1x32xf32> to vector<8x32xf32>
    %57 = vector.extract_strided_slice %50 {offsets = [0, 3, 0], sizes = [8, 1, 32], strides = [1, 1, 1]} : vector<8x4x32xf32> to vector<8x1x32xf32>
    %58 = vector.shape_cast %57 : vector<8x1x32xf32> to vector<8x32xf32>
    %59 = tpu.concatenate %52, %54, %56, %58 in 1 : vector<8x32xf32>, vector<8x32xf32>, vector<8x32xf32>, vector<8x32xf32> -> vector<8x128xf32>
    %c0_26 = arith.constant 0 : index
    %c0_27 = arith.constant 0 : index
    %60 = vector.load %arg10[%c0_26, %c0_27] : memref<8x128xf32, #tpu.memory_space<vmem>>, vector<8x128xf32>
    tpu.vector_store %arg10[%c0_26, %c0_27], %59 {strides = array<i32>} : memref<8x128xf32, #tpu.memory_space<vmem>>, vector<8x128xf32>,
    return
  }
  func.func @transform_0(%arg0: i32) -> (i32, i32) {
    %c0_i32 = arith.constant 0 : i32
    %c0_i32_0 = arith.constant 0 : i32
    return %arg0, %c0_i32 : i32, i32
  }
  func.func @transform_1(%arg0: i32) -> (i32, i32) {
    %c0_i32 = arith.constant 0 : i32
    %c0_i32_0 = arith.constant 0 : i32
    %c0_i32_1 = arith.constant 0 : i32
    return %c0_i32, %c0_i32_0 : i32, i32
  }
  func.func @transform_2(%arg0: i32) -> (i32, i32) {
    %c0_i32 = arith.constant 0 : i32
    %c0_i32_0 = arith.constant 0 : i32
    %c0_i32_1 = arith.constant 0 : i32
    return %c0_i32, %c0_i32_0 : i32, i32
  }
  func.func @transform_3(%arg0: i32) -> (i32, i32) {
    %c0_i32 = arith.constant 0 : i32
    %c0_i32_0 = arith.constant 0 : i32
    %c0_i32_1 = arith.constant 0 : i32
    return %c0_i32, %c0_i32_0 : i32, i32
  }
  func.func @transform_4(%arg0: i32) -> (i32, i32) {
    %c0_i32 = arith.constant 0 : i32
    %c0_i32_0 = arith.constant 0 : i32
    %c0_i32_1 = arith.constant 0 : i32
    return %c0_i32, %c0_i32_0 : i32, i32
  }
  func.func @transform_5(%arg0: i32) -> (i32, i32) {
    %c0_i32 = arith.constant 0 : i32
    %c0_i32_0 = arith.constant 0 : i32
    %c0_i32_1 = arith.constant 0 : i32
    return %c0_i32, %c0_i32_0 : i32, i32
  }
  func.func @transform_6(%arg0: i32) -> (i32, i32) {
    %c0_i32 = arith.constant 0 : i32
    %c0_i32_0 = arith.constant 0 : i32
    %c0_i32_1 = arith.constant 0 : i32
    return %c0_i32, %c0_i32_0 : i32, i32
  }
  func.func @transform_7(%arg0: i32) -> (i32, i32) {
    %c0_i32 = arith.constant 0 : i32
    %c0_i32_0 = arith.constant 0 : i32
    %c0_i32_1 = arith.constant 0 : i32
    return %c0_i32, %c0_i32_0 : i32, i32
  }
  func.func @transform_8(%arg0: i32) -> (i32, i32) {
    %c0_i32 = arith.constant 0 : i32
    %c0_i32_0 = arith.constant 0 : i32
    %c0_i32_1 = arith.constant 0 : i32
    return %c0_i32, %c0_i32_0 : i32, i32
  }
  func.func @transform_9(%arg0: i32) -> (i32, i32) {
    %c0_i32 = arith.constant 0 : i32
    %c0_i32_0 = arith.constant 0 : i32
    return %arg0, %c0_i32 : i32, i32
  }
}

</mosaic_0001>

<llo_original>
// kernel: tpu_custom_call.1
$region0: #{tpu_custom_call.1}
  #allocation0 [shape = 'u32[]', space=smem, size = 0x4, offset = 0x4, fixed_abs, tag = 'smem constant byte address 0x4 - core index']
  #allocation1 [shape = 'u32[144,128]{1,0:T(1,128)}', space=vmem, size = 0x12000, scoped, tag = 'internal scratch']
  %s0 = inlined_call_operand.vmem [shape: f32[512,32], index: 0, kind: input, shape index: {}]
  %s1 = inlined_call_operand.vmem [shape: f32[32,32], index: 1, kind: input, shape index: {}]
  %s2 = inlined_call_operand.vmem [shape: f32[1,32], index: 2, kind: input, shape index: {}]
  %s3 = inlined_call_operand.vmem [shape: f32[32,64], index: 3, kind: input, shape index: {}]
  %s4 = inlined_call_operand.vmem [shape: f32[1,64], index: 4, kind: input, shape index: {}]
  %s5 = inlined_call_operand.vmem [shape: f32[32,8], index: 5, kind: input, shape index: {}]
  %s6 = inlined_call_operand.vmem [shape: f32[1,8], index: 6, kind: input, shape index: {}]
  %s7 = inlined_call_operand.vmem [shape: f32[8,32], index: 7, kind: input, shape index: {}]
  %s8 = inlined_call_operand.vmem [shape: f32[1,32], index: 8, kind: input, shape index: {}]
  %s9 = inlined_call_operand.hbm [shape: f32[16,128], index: 9, kind: output, shape index: {}]
  %s10 = sld [smem:[#allocation0]]
  $region69: #{tpu_custom_call.1} parent=0
    _
  %s12 = ssub.s32 1, %s10
  %s13 = scalar_select 0, %s12, %s10
  $region1: #{tpu_custom_call.1} parent=0
    #allocation2 [shape = 'u8[8192]{0}', space=vmem, size = 0x2000, scoped, tag = 'output window, operand 0']
    #allocation3 [shape = 's32[2]{0}', space=sflag, size = 0x8, scoped, tag = 'scoped memory for tpu_custom_call.1']
    %14 = vsyncpa [#allocation3], 0
    %s15 = scalar_lea.sflag [#allocation3], 1
    %16 = vsyncpa %s15, 0
    loop: start=0, step=1, limit=4
    $region2: #{tpu_custom_call.1} parent=1 // loop_pre_header
      _
    $region3: #{tpu_custom_call.1} parent=1 // loop_header
      %s18 = sphi 0, %s22
      %p19 = scmp.ge.s32.totalorder %s18, 4
      %s28 = sphi 0, %s30
      %s31 = sphi 0, %s28
      %s32 = sphi 0, %s31
      %s48 = sphi 0, %s32
      %s52 = sphi 0, %s52
      %s54 = sphi 0, %s52
      %s55 = sphi 0, %s54
      %s69 = sphi 0, %s55
      %s73 = sphi 0, %s73
      %s75 = sphi 0, %s73
      %s76 = sphi 0, %s75
      %s90 = sphi 0, %s76
      %s94 = sphi 0, %s94
      %s96 = sphi 0, %s94
      %s97 = sphi 0, %s96
      %s111 = sphi 0, %s97
      %s115 = sphi 0, %s115
      %s117 = sphi 0, %s115
      %s118 = sphi 0, %s117
      %s132 = sphi 0, %s118
      %s136 = sphi 0, %s136
      %s138 = sphi 0, %s136
      %s139 = sphi 0, %s138
      %s153 = sphi 0, %s139
      %s157 = sphi 0, %s157
      %s159 = sphi 0, %s157
      %s160 = sphi 0, %s159
      %s174 = sphi 0, %s160
      %s178 = sphi 0, %s178
      %s180 = sphi 0, %s178
      %s181 = sphi 0, %s180
      %s195 = sphi 0, %s181
      %s199 = sphi 0, %s199
      %s201 = sphi 0, %s199
      %s202 = sphi 0, %s201
      %s216 = sphi 0, %s202
      %s222 = sphi 0, %s224
      %s225 = sphi 0, %s222
      %s226 = sphi 0, %s225
      %s242 = sphi 0, %s226
    $region4: #{tpu_custom_call.1} parent=1 // loop_header_branch
      %21 = sbr.rel (%p19) target = $region8
    $region5: #{tpu_custom_call.1} parent=1 // loop_body
      %s23 = ssub.s32 %s18, 1
      %s24 = ssub.s32 %s18, 2
      %s25 = sadd.s32 %s18, 1
      %s26 = ssub.s32 %s18, %s25
      %p27 = scmp.eq.s32.totalorder %s26, 0
      %s29 = sadd.s32 %s28, 1
      %s30 = scalar_select %p27, %s28, %s29
      %p33 = pneg %p27
      %p34 = scmp.eq.s32.totalorder %s18, 1
      %p35 = por %p33, %p34
      %p36 = scmp.ne.s32.totalorder %s28, %s31
      %p37 = scmp.eq.s32.totalorder %s18, 0
      %p38 = por %p36, %p37
      %p39 = scmp.ne.s32.totalorder %s28, %s31
      %p40 = scmp.eq.s32.totalorder %s23, 1
      %p41 = por %p39, %p40
      %p42 = scmp.ne.s32.totalorder %s31, %s32
      %p43 = scmp.eq.s32.totalorder %s23, 0
      %p44 = por %p42, %p43
      %p45 = scmp.ne.s32.totalorder %s31, %s32
      %p46 = scmp.eq.s32.totalorder %s24, 1
      %p47 = por %p45, %p46
      %p49 = scmp.ne.s32.totalorder %s32, %s48
      %p50 = scmp.eq.s32.totalorder %s24, 0
      %p51 = por %p49, %p50
      %s53 = sadd.s32 %s52, 1
      %p56 = scmp.eq.s32.totalorder %s18, 1
      %p57 = scmp.ne.s32.totalorder %s52, %s54
      %p58 = scmp.eq.s32.totalorder %s18, 0
      %p59 = por %p57, %p58
      %p60 = scmp.ne.s32.totalorder %s52, %s54
      %p61 = scmp.eq.s32.totalorder %s23, 1
      %p62 = por %p60, %p61
      %p63 = scmp.ne.s32.totalorder %s54, %s55
      %p64 = scmp.eq.s32.totalorder %s23, 0
      %p65 = por %p63, %p64
      %p66 = scmp.ne.s32.totalorder %s54, %s55
      %p67 = scmp.eq.s32.totalorder %s24, 1
      %p68 = por %p66, %p67
      %p70 = scmp.ne.s32.totalorder %s55, %s69
      %p71 = scmp.eq.s32.totalorder %s24, 0
      %p72 = por %p70, %p71
      %s74 = sadd.s32 %s73, 1
      %p77 = scmp.eq.s32.totalorder %s18, 1
      %p78 = scmp.ne.s32.totalorder %s73, %s75
      %p79 = scmp.eq.s32.totalorder %s18, 0
      %p80 = por %p78, %p79
      %p81 = scmp.ne.s32.totalorder %s73, %s75
      %p82 = scmp.eq.s32.totalorder %s23, 1
      %p83 = por %p81, %p82
      %p84 = scmp.ne.s32.totalorder %s75, %s76
      %p85 = scmp.eq.s32.totalorder %s23, 0
      %p86 = por %p84, %p85
      %p87 = scmp.ne.s32.totalorder %s75, %s76
      %p88 = scmp.eq.s32.totalorder %s24, 1
      %p89 = por %p87, %p88
      %p91 = scmp.ne.s32.totalorder %s76, %s90
      %p92 = scmp.eq.s32.totalorder %s24, 0
      %p93 = por %p91, %p92
      %s95 = sadd.s32 %s94, 1
      %p98 = scmp.eq.s32.totalorder %s18, 1
      %p99 = scmp.ne.s32.totalorder %s94, %s96
      %p100 = scmp.eq.s32.totalorder %s18, 0
      %p101 = por %p99, %p100
      %p102 = scmp.ne.s32.totalorder %s94, %s96
      %p103 = scmp.eq.s32.totalorder %s23, 1
      %p104 = por %p102, %p103
      %p105 = scmp.ne.s32.totalorder %s96, %s97
      %p106 = scmp.eq.s32.totalorder %s23, 0
      %p107 = por %p105, %p106
      %p108 = scmp.ne.s32.totalorder %s96, %s97
      %p109 = scmp.eq.s32.totalorder %s24, 1
      %p110 = por %p108, %p109
      %p112 = scmp.ne.s32.totalorder %s97, %s111
      %p113 = scmp.eq.s32.totalorder %s24, 0
      %p114 = por %p112, %p113
      %s116 = sadd.s32 %s115, 1
      %p119 = scmp.eq.s32.totalorder %s18, 1
      %p120 = scmp.ne.s32.totalorder %s115, %s117
      %p121 = scmp.eq.s32.totalorder %s18, 0
      %p122 = por %p120, %p121
      %p123 = scmp.ne.s32.totalorder %s115, %s117
      %p124 = scmp.eq.s32.totalorder %s23, 1
      %p125 = por %p123, %p124
      %p126 = scmp.ne.s32.totalorder %s117, %s118
      %p127 = scmp.eq.s32.totalorder %s23, 0
      %p128 = por %p126, %p127
      %p129 = scmp.ne.s32.totalorder %s117, %s118
      %p130 = scmp.eq.s32.totalorder %s24, 1
      %p131 = por %p129, %p130
      %p133 = scmp.ne.s32.totalorder %s118, %s132
      %p134 = scmp.eq.s32.totalorder %s24, 0
      %p135 = por %p133, %p134
      %s137 = sadd.s32 %s136, 1
      %p140 = scmp.eq.s32.totalorder %s18, 1
      %p141 = scmp.ne.s32.totalorder %s136, %s138
      %p142 = scmp.eq.s32.totalorder %s18, 0
      %p143 = por %p141, %p142
      %p144 = scmp.ne.s32.totalorder %s136, %s138
      %p145 = scmp.eq.s32.totalorder %s23, 1
      %p146 = por %p144, %p145
      %p147 = scmp.ne.s32.totalorder %s138, %s139
      %p148 = scmp.eq.s32.totalorder %s23, 0
      %p149 = por %p147, %p148
      %p150 = scmp.ne.s32.totalorder %s138, %s139
      %p151 = scmp.eq.s32.totalorder %s24, 1
      %p152 = por %p150, %p151
      %p154 = scmp.ne.s32.totalorder %s139, %s153
      %p155 = scmp.eq.s32.totalorder %s24, 0
      %p156 = por %p154, %p155
      %s158 = sadd.s32 %s157, 1
      %p161 = scmp.eq.s32.totalorder %s18, 1
      %p162 = scmp.ne.s32.totalorder %s157, %s159
      %p163 = scmp.eq.s32.totalorder %s18, 0
      %p164 = por %p162, %p163
      %p165 = scmp.ne.s32.totalorder %s157, %s159
      %p166 = scmp.eq.s32.totalorder %s23, 1
      %p167 = por %p165, %p166
      %p168 = scmp.ne.s32.totalorder %s159, %s160
      %p169 = scmp.eq.s32.totalorder %s23, 0
      %p170 = por %p168, %p169
      %p171 = scmp.ne.s32.totalorder %s159, %s160
      %p172 = scmp.eq.s32.totalorder %s24, 1
      %p173 = por %p171, %p172
      %p175 = scmp.ne.s32.totalorder %s160, %s174
      %p176 = scmp.eq.s32.totalorder %s24, 0
      %p177 = por %p175, %p176
      %s179 = sadd.s32 %s178, 1
      %p182 = scmp.eq.s32.totalorder %s18, 1
      %p183 = scmp.ne.s32.totalorder %s178, %s180
      %p184 = scmp.eq.s32.totalorder %s18, 0
      %p185 = por %p183, %p184
      %p186 = scmp.ne.s32.totalorder %s178, %s180
      %p187 = scmp.eq.s32.totalorder %s23, 1
      %p188 = por %p186, %p187
      %p189 = scmp.ne.s32.totalorder %s180, %s181
      %p190 = scmp.eq.s32.totalorder %s23, 0
      %p191 = por %p189, %p190
      %p192 = scmp.ne.s32.totalorder %s180, %s181
      %p193 = scmp.eq.s32.totalorder %s24, 1
      %p194 = por %p192, %p193
      %p196 = scmp.ne.s32.totalorder %s181, %s195
      %p197 = scmp.eq.s32.totalorder %s24, 0
      %p198 = por %p196, %p197
      %s200 = sadd.s32 %s199, 1
      %p203 = scmp.eq.s32.totalorder %s18, 1
      %p204 = scmp.ne.s32.totalorder %s199, %s201
      %p205 = scmp.eq.s32.totalorder %s18, 0
      %p206 = por %p204, %p205
      %p207 = scmp.ne.s32.totalorder %s199, %s201
      %p208 = scmp.eq.s32.totalorder %s23, 1
      %p209 = por %p207, %p208
      %p210 = scmp.ne.s32.totalorder %s201, %s202
      %p211 = scmp.eq.s32.totalorder %s23, 0
      %p212 = por %p210, %p211
      %p213 = scmp.ne.s32.totalorder %s201, %s202
      %p214 = scmp.eq.s32.totalorder %s24, 1
      %p215 = por %p213, %p214
      %p217 = scmp.ne.s32.totalorder %s202, %s216
      %p218 = scmp.eq.s32.totalorder %s24, 0
      %p219 = por %p217, %p218
      %s220 = ssub.s32 %s18, %s25
      %p221 = scmp.eq.s32.totalorder %s220, 0
      %s223 = sadd.s32 %s222, 1
      %s224 = scalar_select %p221, %s222, %s223
      %p227 = pneg %p221
      %p228 = scmp.eq.s32.totalorder %s18, 1
      %p229 = por %p227, %p228
      %p230 = scmp.ne.s32.totalorder %s222, %s225
      %p231 = scmp.eq.s32.totalorder %s18, 0
      %p232 = por %p230, %p231
      %p233 = scmp.ne.s32.totalorder %s222, %s225
      %p234 = scmp.eq.s32.totalorder %s23, 1
      %p235 = por %p233, %p234
      %p236 = scmp.ne.s32.totalorder %s225, %s226
      %p237 = scmp.eq.s32.totalorder %s23, 0
      %p238 = por %p236, %p237
      %p239 = scmp.ne.s32.totalorder %s225, %s226
      %p240 = scmp.eq.s32.totalorder %s24, 1
      %p241 = por %p239, %p240
      %p243 = scmp.ne.s32.totalorder %s226, %s242
      %p244 = scmp.eq.s32.totalorder %s24, 0
      %p245 = por %p243, %p244
      %p246 = scmp.le.s32.totalorder 1, %s18
      %p247 = scmp.lt.s32.totalorder %s18, 3
      %p248 = pnand %p246, %p247
      %p249 = pneg %p248
      // Predicated region
      $region9: #{tpu_custom_call.1} parent=5 // pred_check
        _
      $region10: #{tpu_custom_call.1} parent=5 // pred_check_branch
        %251 = sbr.rel (%p248) target = $region12
      $region11: #{tpu_custom_call.1} parent=5 // pred_region
        %s252 = ssub.s32 %s18, 1
        // Predicated region
        $region13: #{tpu_custom_call.1} parent=11 // pred_check
          %p253 = pneg %p65
        $region14: #{tpu_custom_call.1} parent=11 // pred_check_branch
          %255 = sbr.rel (%p253) target = $region16
        $region15: #{tpu_custom_call.1} parent=11 // pred_region
          _
        $region16: #{tpu_custom_call.1} parent=11 // pred_fallthru
          _
        // Predicated region
        $region17: #{tpu_custom_call.1} parent=11 // pred_check
          %p256 = pneg %p86
        $region18: #{tpu_custom_call.1} parent=11 // pred_check_branch
          %258 = sbr.rel (%p256) target = $region20
        $region19: #{tpu_custom_call.1} parent=11 // pred_region
          _
        $region20: #{tpu_custom_call.1} parent=11 // pred_fallthru
          _
        // Predicated region
        $region21: #{tpu_custom_call.1} parent=11 // pred_check
          %p259 = pneg %p107
        $region22: #{tpu_custom_call.1} parent=11 // pred_check_branch
          %261 = sbr.rel (%p259) target = $region24
        $region23: #{tpu_custom_call.1} parent=11 // pred_region
          _
        $region24: #{tpu_custom_call.1} parent=11 // pred_fallthru
          _
        // Predicated region
        $region25: #{tpu_custom_call.1} parent=11 // pred_check
          %p262 = pneg %p128
        $region26: #{tpu_custom_call.1} parent=11 // pred_check_branch
          %264 = sbr.rel (%p262) target = $region28
        $region27: #{tpu_custom_call.1} parent=11 // pred_region
          _
        $region28: #{tpu_custom_call.1} parent=11 // pred_fallthru
          _
        // Predicated region
        $region29: #{tpu_custom_call.1} parent=11 // pred_check
          %p265 = pneg %p149
        $region30: #{tpu_custom_call.1} parent=11 // pred_check_branch
          %267 = sbr.rel (%p265) target = $region32
        $region31: #{tpu_custom_call.1} parent=11 // pred_region
          _
        $region32: #{tpu_custom_call.1} parent=11 // pred_fallthru
          _
        // Predicated region
        $region33: #{tpu_custom_call.1} parent=11 // pred_check
          %p268 = pneg %p170
        $region34: #{tpu_custom_call.1} parent=11 // pred_check_branch
          %270 = sbr.rel (%p268) target = $region36
        $region35: #{tpu_custom_call.1} parent=11 // pred_region
          _
        $region36: #{tpu_custom_call.1} parent=11 // pred_fallthru
          _
        // Predicated region
        $region37: #{tpu_custom_call.1} parent=11 // pred_check
          %p271 = pneg %p191
        $region38: #{tpu_custom_call.1} parent=11 // pred_check_branch
          %273 = sbr.rel (%p271) target = $region40
        $region39: #{tpu_custom_call.1} parent=11 // pred_region
          _
        $region40: #{tpu_custom_call.1} parent=11 // pred_fallthru
          _
        // Predicated region
        $region41: #{tpu_custom_call.1} parent=11 // pred_check
          %p274 = pneg %p212
        $region42: #{tpu_custom_call.1} parent=11 // pred_check_branch
          %276 = sbr.rel (%p274) target = $region44
        $region43: #{tpu_custom_call.1} parent=11 // pred_region
          _
        $region44: #{tpu_custom_call.1} parent=11 // pred_fallthru
          _
      $region12: #{tpu_custom_call.1} parent=5 // pred_fallthru
        _
      %p277 = scmp.lt.s32.totalorder %s18, 2
      // Predicated region
      $region45: #{tpu_custom_call.1} parent=5 // pred_check
        %p278 = pneg %p277
      $region46: #{tpu_custom_call.1} parent=5 // pred_check_branch
        %280 = sbr.rel (%p278) target = $region48
      $region47: #{tpu_custom_call.1} parent=5 // pred_region
        // Predicated region
        $region49: #{tpu_custom_call.1} parent=47 // pred_check
          %p281 = pneg %p38
        $region50: #{tpu_custom_call.1} parent=47 // pred_check_branch
          %283 = sbr.rel (%p281) target = $region52
        $region51: #{tpu_custom_call.1} parent=47 // pred_region
          %s284 = smul.u32 32, %s18
          %p285 = scmp.lt.s32.totalorder %s284, 63
          %s286 = scalar_select %p285, %s284, 63
          %s287 = smul.addr %s286, 8
          %s288 = scalar_lea.vmem %s0, %s287
          %s289 = smul.u32 32, %s18
        $region52: #{tpu_custom_call.1} parent=47 // pred_fallthru
          _
      $region48: #{tpu_custom_call.1} parent=5 // pred_fallthru
        _
      %p290 = scmp.le.s32.totalorder 1, %s18
      %p291 = scmp.lt.s32.totalorder %s18, 3
      %p292 = pnand %p290, %p291
      %p293 = pneg %p292
      // Predicated region
      $region53: #{tpu_custom_call.1} parent=5 // pred_check
        _
      $region54: #{tpu_custom_call.1} parent=5 // pred_check_branch
        %295 = sbr.rel (%p292) target = $region56
      $region55: #{tpu_custom_call.1} parent=5 // pred_region
        %s296 = ssub.s32 %s18, 1
        %s297 = smul.u32 32, %s23
        %p298 = scmp.lt.s32.totalorder %s297, 63
        %s299 = scalar_select %p298, %s297, 63
        %s300 = smul.addr %s299, 8
        %s301 = scalar_lea.vmem %s0, %s300
        %p302 = pneg %p44
        %p303 = pneg %p41
        %p304 = pneg %p65
        %p305 = pneg %p62
        %p306 = pneg %p86
        %p307 = pneg %p83
        %p308 = pneg %p107
        %p309 = pneg %p104
        %p310 = pneg %p128
        %p311 = pneg %p125
        %p312 = pneg %p149
        %p313 = pneg %p146
        %p314 = pneg %p170
        %p315 = pneg %p167
        %p316 = pneg %p191
        %p317 = pneg %p188
        %p318 = pneg %p212
        %p319 = pneg %p209
        %p320 = pneg %p238
        %p321 = pneg %p235
        %s322 = sand.u32 %s225, 1
        %s323 = scalar_lea.sflag [#allocation3], %s322
        %s324 = sand.u32 %s225, 1
        %s325 = smul.addr %s324, 8
        %s326 = scalar_lea.vmem [#allocation2], %s325
        %s327 = smul.u32 32, %s23
        %p328 = scmp.lt.s32.totalorder %s327, 63
        %s329 = scalar_select %p328, %s327, 63
        %s330 = smul.addr %s329, 8
        %s331 = scalar_lea.vmem %s0, %s330
        %s332 = smul.u32 32, %s23
        %v333 = vld [vmem:[%s331] sm:$0xff]
        %v334 = vld [vmem:[%s331 + $0x8] sm:$0xff]
        %v335 = vld [vmem:[%s331 + $0x10] sm:$0xff]
        %v336 = vld [vmem:[%s331 + $0x18] sm:$0xff]
        %v337 = vld [vmem:[%s331 + $0x20] sm:$0xff]
        %v338 = vld [vmem:[%s331 + $0x28] sm:$0xff]
        %v339 = vld [vmem:[%s331 + $0x30] sm:$0xff]
        %v340 = vld [vmem:[%s331 + $0x38] sm:$0xff]
        %v341 = vld [vmem:[%s331 + $0x40] sm:$0xff]
        %v342 = vld [vmem:[%s331 + $0x48] sm:$0xff]
        %v343 = vld [vmem:[%s331 + $0x50] sm:$0xff]
        %v344 = vld [vmem:[%s331 + $0x58] sm:$0xff]
        %v345 = vld [vmem:[%s331 + $0x60] sm:$0xff]
        %v346 = vld [vmem:[%s331 + $0x68] sm:$0xff]
        %v347 = vld [vmem:[%s331 + $0x70] sm:$0xff]
        %v348 = vld [vmem:[%s331 + $0x78] sm:$0xff]
        %v349 = vld [vmem:[%s331 + $0x80] sm:$0xff]
        %v350 = vld [vmem:[%s331 + $0x88] sm:$0xff]
        %v351 = vld [vmem:[%s331 + $0x90] sm:$0xff]
        %v352 = vld [vmem:[%s331 + $0x98] sm:$0xff]
        %v353 = vld [vmem:[%s331 + $0xa0] sm:$0xff]
        %v354 = vld [vmem:[%s331 + $0xa8] sm:$0xff]
        %v355 = vld [vmem:[%s331 + $0xb0] sm:$0xff]
        %v356 = vld [vmem:[%s331 + $0xb8] sm:$0xff]
        %v357 = vld [vmem:[%s331 + $0xc0] sm:$0xff]
        %v358 = vld [vmem:[%s331 + $0xc8] sm:$0xff]
        %v359 = vld [vmem:[%s331 + $0xd0] sm:$0xff]
        %v360 = vld [vmem:[%s331 + $0xd8] sm:$0xff]
        %v361 = vld [vmem:[%s331 + $0xe0] sm:$0xff]
        %v362 = vld [vmem:[%s331 + $0xe8] sm:$0xff]
        %v363 = vld [vmem:[%s331 + $0xf0] sm:$0xff]
        %v364 = vld [vmem:[%s331 + $0xf8] sm:$0xff]
        %v365 = vld [vmem:[%s1] sm:$0xff]
        %v366 = vld [vmem:[%s1 + $0x8] sm:$0xff]
        %v367 = vld [vmem:[%s1 + $0x10] sm:$0xff]
        %v368 = vld [vmem:[%s1 + $0x18] sm:$0xff]
        %v369 = vld [vmem:[%s2] sm:$0x1]
        %v371 = vlaneseq
        %v372 = vshrl.u32 %v371, 7
        %v373 = vsub.s32 0, %v372
        %v374 = vrot.slane %v369, %v373
        %vm376 = vcmask 261120
        %v378 = vsel %vm376, %v333, 0
        %v381 = vsel %vm376, %v334, 0
        %v384 = vsel %vm376, %v335, 0
        %v387 = vsel %vm376, %v336, 0
        %v390 = vsel %vm376, %v337, 0
        %v393 = vsel %vm376, %v338, 0
        %v396 = vsel %vm376, %v339, 0
        %v399 = vsel %vm376, %v340, 0
        %v402 = vsel %vm376, %v341, 0
        %v405 = vsel %vm376, %v342, 0
        %v408 = vsel %vm376, %v343, 0
        %v411 = vsel %vm376, %v344, 0
        %v414 = vsel %vm376, %v345, 0
        %v417 = vsel %vm376, %v346, 0
        %v420 = vsel %vm376, %v347, 0
        %v423 = vsel %vm376, %v348, 0
        %v426 = vsel %vm376, %v349, 0
        %v429 = vsel %vm376, %v350, 0
        %v432 = vsel %vm376, %v351, 0
        %v435 = vsel %vm376, %v352, 0
        %v438 = vsel %vm376, %v353, 0
        %v441 = vsel %vm376, %v354, 0
        %v444 = vsel %vm376, %v355, 0
        %v447 = vsel %vm376, %v356, 0
        %v450 = vsel %vm376, %v357, 0
        %v453 = vsel %vm376, %v358, 0
        %v456 = vsel %vm376, %v359, 0
        %v459 = vsel %vm376, %v360, 0
        %v462 = vsel %vm376, %v361, 0
        %v465 = vsel %vm376, %v362, 0
        %v468 = vsel %vm376, %v363, 0
        %v471 = vsel %vm376, %v364, 0
        %473 = vmatprep.subr.mxu0 0.0
        %474 = vmatpush1.msra.mxu0 0.0
        %475 = vmatprep.subr.mxu0 0.0
        %476 = vmatpush1.msra.mxu0 0.0
        %477 = vmatprep.subr.mxu0 0.0
        %478 = vmatpush1.msra.mxu0 0.0
        %479 = vmatprep.subr.mxu0 0.0
        %480 = vmatpush1.msra.mxu0 0.0
        %481 = vmatprep.subr.mxu0 0.0
        %482 = vmatpush1.msra.mxu0 0.0
        %483 = vmatprep.subr.mxu0 0.0
        %484 = vmatpush1.msra.mxu0 0.0
        %485 = vmatprep.subr.mxu0 0.0
        %486 = vmatpush1.msra.mxu0 0.0
        %487 = vmatprep.subr.mxu0 0.0
        %488 = vmatpush1.msra.mxu0 0.0
        %489 = vmatprep.subr.mxu0 0.0
        %490 = vmatpush1.msra.mxu0 0.0
        %491 = vmatprep.subr.mxu0 0.0
        %492 = vmatpush1.msra.mxu0 0.0
        %493 = vmatprep.subr.mxu0 0.0
        %494 = vmatpush1.msra.mxu0 0.0
        %495 = vmatprep.subr.mxu0 0.0
        %496 = vmatpush1.msra.mxu0 0.0
        %497 = vmatprep.subr.mxu0 0.0
        %498 = vmatpush1.msra.mxu0 %v368
        %499 = vmatprep.subr.mxu0 0.0
        %500 = vmatpush1.msra.mxu0 %v367
        %501 = vmatprep.subr.mxu0 0.0
        %502 = vmatpush1.msra.mxu0 %v366
        %503 = vmatprep.subr.mxu0 0.0
        %504 = vmatpush1.msra.mxu0 %v365
        %505 = vmatprep.subr.mxu0 0.0
        %506 = vmatpush2.msra.mxu0 0.0
        %507 = vmatprep.subr.mxu0 0.0
        %508 = vmatpush2.msra.mxu0 0.0
        %509 = vmatprep.subr.mxu0 0.0
        %510 = vmatpush2.msra.mxu0 0.0
        %511 = vmatprep.subr.mxu0 0.0
        %512 = vmatpush2.msra.mxu0 0.0
        %513 = vmatprep.subr.mxu0 0.0
        %514 = vmatpush2.msra.mxu0 0.0
        %515 = vmatprep.subr.mxu0 0.0
        %516 = vmatpush2.msra.mxu0 0.0
        %517 = vmatprep.subr.mxu0 0.0
        %518 = vmatpush2.msra.mxu0 0.0
        %519 = vmatprep.subr.mxu0 0.0
        %520 = vmatpush2.msra.mxu0 0.0
        %521 = vmatprep.subr.mxu0 0.0
        %522 = vmatpush2.msra.mxu0 0.0
        %523 = vmatprep.subr.mxu0 0.0
        %524 = vmatpush2.msra.mxu0 0.0
        %525 = vmatprep.subr.mxu0 0.0
        %526 = vmatpush2.msra.mxu0 0.0
        %527 = vmatprep.subr.mxu0 0.0
        %528 = vmatpush2.msra.mxu0 0.0
        %529 = vmatprep.subr.mxu0 0.0
        %530 = vmatpush2.msra.mxu0 0.0
        %531 = vmatprep.subr.mxu0 0.0
        %532 = vmatpush2.msra.mxu0 0.0
        %533 = vmatprep.subr.mxu0 0.0
        %534 = vmatpush2.msra.mxu0 0.0
        %535 = vmatprep.subr.mxu0 0.0
        %536 = vmatpush2.msra.mxu0 0.0
        %537 = vmatprep.mubr.f32.mxu0 0.0
        %538 = vmatmul.mubr.f32.gmra.mxu0 %v378
        %v539 = vpop.f32.mrf.mxu0
        %v540 = vadd.f32 %v374, %v539
        %v541 = vpop.f32.mrf.mxu0
        %542 = vmatprep.mubr.f32.mxu0 0.0
        %543 = vmatmul.mubr.f32.gmra.mxu0 %v381
        %v544 = vpop.f32.mrf.mxu0
        %v545 = vadd.f32 %v374, %v544
        %v546 = vpop.f32.mrf.mxu0
        %547 = vmatprep.mubr.f32.mxu0 0.0
        %548 = vmatmul.mubr.f32.gmra.mxu0 %v384
        %v549 = vpop.f32.mrf.mxu0
        %v550 = vadd.f32 %v374, %v549
        %v551 = vpop.f32.mrf.mxu0
        %552 = vmatprep.mubr.f32.mxu0 0.0
        %553 = vmatmul.mubr.f32.gmra.mxu0 %v387
        %v554 = vpop.f32.mrf.mxu0
        %v555 = vadd.f32 %v374, %v554
        %v556 = vpop.f32.mrf.mxu0
        %557 = vmatprep.mubr.f32.mxu0 0.0
        %558 = vmatmul.mubr.f32.gmra.mxu0 %v390
        %v559 = vpop.f32.mrf.mxu0
        %v560 = vadd.f32 %v374, %v559
        %v561 = vpop.f32.mrf.mxu0
        %562 = vmatprep.mubr.f32.mxu0 0.0
        %563 = vmatmul.mubr.f32.gmra.mxu0 %v393
        %v564 = vpop.f32.mrf.mxu0
        %v565 = vadd.f32 %v374, %v564
        %v566 = vpop.f32.mrf.mxu0
        %567 = vmatprep.mubr.f32.mxu0 0.0
        %568 = vmatmul.mubr.f32.gmra.mxu0 %v396
        %v569 = vpop.f32.mrf.mxu0
        %v570 = vadd.f32 %v374, %v569
        %v571 = vpop.f32.mrf.mxu0
        %572 = vmatprep.mubr.f32.mxu0 0.0
        %573 = vmatmul.mubr.f32.gmra.mxu0 %v399
        %v574 = vpop.f32.mrf.mxu0
        %v575 = vadd.f32 %v374, %v574
        %v576 = vpop.f32.mrf.mxu0
        %577 = vmatprep.mubr.f32.mxu0 0.0
        %578 = vmatmul.mubr.f32.gmra.mxu0 %v402
        %v579 = vpop.f32.mrf.mxu0
        %v580 = vadd.f32 %v374, %v579
        %v581 = vpop.f32.mrf.mxu0
        %582 = vmatprep.mubr.f32.mxu0 0.0
        %583 = vmatmul.mubr.f32.gmra.mxu0 %v405
        %v584 = vpop.f32.mrf.mxu0
        %v585 = vadd.f32 %v374, %v584
        %v586 = vpop.f32.mrf.mxu0
        %587 = vmatprep.mubr.f32.mxu0 0.0
        %588 = vmatmul.mubr.f32.gmra.mxu0 %v408
        %v589 = vpop.f32.mrf.mxu0
        %v590 = vadd.f32 %v374, %v589
        %v591 = vpop.f32.mrf.mxu0
        %592 = vmatprep.mubr.f32.mxu0 0.0
        %593 = vmatmul.mubr.f32.gmra.mxu0 %v411
        %v594 = vpop.f32.mrf.mxu0
        %v595 = vadd.f32 %v374, %v594
        %v596 = vpop.f32.mrf.mxu0
        %597 = vmatprep.mubr.f32.mxu0 0.0
        %598 = vmatmul.mubr.f32.gmra.mxu0 %v414
        %v599 = vpop.f32.mrf.mxu0
        %v600 = vadd.f32 %v374, %v599
        %v601 = vpop.f32.mrf.mxu0
        %602 = vmatprep.mubr.f32.mxu0 0.0
        %603 = vmatmul.mubr.f32.gmra.mxu0 %v417
        %v604 = vpop.f32.mrf.mxu0
        %v605 = vadd.f32 %v374, %v604
        %v606 = vpop.f32.mrf.mxu0
        %607 = vmatprep.mubr.f32.mxu0 0.0
        %608 = vmatmul.mubr.f32.gmra.mxu0 %v420
        %v609 = vpop.f32.mrf.mxu0
        %v610 = vadd.f32 %v374, %v609
        %v611 = vpop.f32.mrf.mxu0
        %612 = vmatprep.mubr.f32.mxu0 0.0
        %613 = vmatmul.mubr.f32.gmra.mxu0 %v423
        %v614 = vpop.f32.mrf.mxu0
        %v615 = vadd.f32 %v374, %v614
        %v616 = vpop.f32.mrf.mxu0
        %617 = vmatprep.mubr.f32.mxu0 0.0
        %618 = vmatmul.mubr.f32.gmra.mxu0 %v426
        %v619 = vpop.f32.mrf.mxu0
        %v620 = vadd.f32 %v374, %v619
        %v621 = vpop.f32.mrf.mxu0
        %622 = vmatprep.mubr.f32.mxu0 0.0
        %623 = vmatmul.mubr.f32.gmra.mxu0 %v429
        %v624 = vpop.f32.mrf.mxu0
        %v625 = vadd.f32 %v374, %v624
        %v626 = vpop.f32.mrf.mxu0
        %627 = vmatprep.mubr.f32.mxu0 0.0
        %628 = vmatmul.mubr.f32.gmra.mxu0 %v432
        %v629 = vpop.f32.mrf.mxu0
        %v630 = vadd.f32 %v374, %v629
        %v631 = vpop.f32.mrf.mxu0
        %632 = vmatprep.mubr.f32.mxu0 0.0
        %633 = vmatmul.mubr.f32.gmra.mxu0 %v435
        %v634 = vpop.f32.mrf.mxu0
        %v635 = vadd.f32 %v374, %v634
        %v636 = vpop.f32.mrf.mxu0
        %637 = vmatprep.mubr.f32.mxu0 0.0
        %638 = vmatmul.mubr.f32.gmra.mxu0 %v438
        %v639 = vpop.f32.mrf.mxu0
        %v640 = vadd.f32 %v374, %v639
        %v641 = vpop.f32.mrf.mxu0
        %642 = vmatprep.mubr.f32.mxu0 0.0
        %643 = vmatmul.mubr.f32.gmra.mxu0 %v441
        %v644 = vpop.f32.mrf.mxu0
        %v645 = vadd.f32 %v374, %v644
        %v646 = vpop.f32.mrf.mxu0
        %647 = vmatprep.mubr.f32.mxu0 0.0
        %648 = vmatmul.mubr.f32.gmra.mxu0 %v444
        %v649 = vpop.f32.mrf.mxu0
        %v650 = vadd.f32 %v374, %v649
        %v651 = vpop.f32.mrf.mxu0
        %652 = vmatprep.mubr.f32.mxu0 0.0
        %653 = vmatmul.mubr.f32.gmra.mxu0 %v447
        %v654 = vpop.f32.mrf.mxu0
        %v655 = vadd.f32 %v374, %v654
        %v656 = vpop.f32.mrf.mxu0
        %657 = vmatprep.mubr.f32.mxu0 0.0
        %658 = vmatmul.mubr.f32.gmra.mxu0 %v450
        %v659 = vpop.f32.mrf.mxu0
        %v660 = vadd.f32 %v374, %v659
        %v661 = vpop.f32.mrf.mxu0
        %662 = vmatprep.mubr.f32.mxu0 0.0
        %663 = vmatmul.mubr.f32.gmra.mxu0 %v453
        %v664 = vpop.f32.mrf.mxu0
        %v665 = vadd.f32 %v374, %v664
        %v666 = vpop.f32.mrf.mxu0
        %667 = vmatprep.mubr.f32.mxu0 0.0
        %668 = vmatmul.mubr.f32.gmra.mxu0 %v456
        %v669 = vpop.f32.mrf.mxu0
        %v670 = vadd.f32 %v374, %v669
        %v671 = vpop.f32.mrf.mxu0
        %672 = vmatprep.mubr.f32.mxu0 0.0
        %673 = vmatmul.mubr.f32.gmra.mxu0 %v459
        %v674 = vpop.f32.mrf.mxu0
        %v675 = vadd.f32 %v374, %v674
        %v676 = vpop.f32.mrf.mxu0
        %677 = vmatprep.mubr.f32.mxu0 0.0
        %678 = vmatmul.mubr.f32.gmra.mxu0 %v462
        %v679 = vpop.f32.mrf.mxu0
        %v680 = vadd.f32 %v374, %v679
        %v681 = vpop.f32.mrf.mxu0
        %682 = vmatprep.mubr.f32.mxu0 0.0
        %683 = vmatmul.mubr.f32.gmra.mxu0 %v465
        %v684 = vpop.f32.mrf.mxu0
        %v685 = vadd.f32 %v374, %v684
        %v686 = vpop.f32.mrf.mxu0
        %687 = vmatprep.mubr.f32.mxu0 0.0
        %688 = vmatmul.mubr.f32.gmra.mxu0 %v468
        %v689 = vpop.f32.mrf.mxu0
        %v690 = vadd.f32 %v374, %v689
        %v691 = vpop.f32.mrf.mxu0
        %692 = vmatprep.mubr.f32.mxu0 0.0
        %693 = vmatmul.mubr.f32.gmra.mxu0 %v471
        %v694 = vpop.f32.mrf.mxu0
        %v695 = vadd.f32 %v374, %v694
        %v696 = vpop.f32.mrf.mxu0
        %697 = vdwg.mxu0
        %v698 = vlaneseq
        %v699 = vand.u32 %v698, 127
        %vm700 = vcmp.lt.s32.totalorder %v699, 16
        %v701 = vmax.f32 %v540, 0.0
        %v702 = vmax.f32 %v545, 0.0
        %v703 = vmax.f32 %v550, 0.0
        %v704 = vmax.f32 %v555, 0.0
        %v705 = vmax.f32 %v560, 0.0
        %v706 = vmax.f32 %v565, 0.0
        %v707 = vmax.f32 %v570, 0.0
        %v708 = vmax.f32 %v575, 0.0
        %v709 = vmax.f32 %v580, 0.0
        %v710 = vmax.f32 %v585, 0.0
        %v711 = vmax.f32 %v590, 0.0
        %v712 = vmax.f32 %v595, 0.0
        %v713 = vmax.f32 %v600, 0.0
        %v714 = vmax.f32 %v605, 0.0
        %v715 = vmax.f32 %v610, 0.0
        %v716 = vmax.f32 %v615, 0.0
        %v717 = vmax.f32 %v620, 0.0
        %v718 = vmax.f32 %v625, 0.0
        %v719 = vmax.f32 %v630, 0.0
        %v720 = vmax.f32 %v635, 0.0
        %v721 = vmax.f32 %v640, 0.0
        %v722 = vmax.f32 %v645, 0.0
        %v723 = vmax.f32 %v650, 0.0
        %v724 = vmax.f32 %v655, 0.0
        %v725 = vmax.f32 %v660, 0.0
        %v726 = vmax.f32 %v665, 0.0
        %v727 = vmax.f32 %v670, 0.0
        %v728 = vmax.f32 %v675, 0.0
        %v729 = vmax.f32 %v680, 0.0
        %v730 = vmax.f32 %v685, 0.0
        %v731 = vmax.f32 %v690, 0.0
        %v732 = vmax.f32 %v695, 0.0
        %v733 = vxor.u32 %v540, 2147483648
        %v734 = vxor.u32 %v545, 2147483648
        %v735 = vxor.u32 %v550, 2147483648
        %v736 = vxor.u32 %v555, 2147483648
        %v737 = vxor.u32 %v560, 2147483648
        %v738 = vxor.u32 %v565, 2147483648
        %v739 = vxor.u32 %v570, 2147483648
        %v740 = vxor.u32 %v575, 2147483648
        %v741 = vxor.u32 %v580, 2147483648
        %v742 = vxor.u32 %v585, 2147483648
        %v743 = vxor.u32 %v590, 2147483648
        %v744 = vxor.u32 %v595, 2147483648
        %v745 = vxor.u32 %v600, 2147483648
        %v746 = vxor.u32 %v605, 2147483648
        %v747 = vxor.u32 %v610, 2147483648
        %v748 = vxor.u32 %v615, 2147483648
        %v749 = vxor.u32 %v620, 2147483648
        %v750 = vxor.u32 %v625, 2147483648
        %v751 = vxor.u32 %v630, 2147483648
        %v752 = vxor.u32 %v635, 2147483648
        %v753 = vxor.u32 %v640, 2147483648
        %v754 = vxor.u32 %v645, 2147483648
        %v755 = vxor.u32 %v650, 2147483648
        %v756 = vxor.u32 %v655, 2147483648
        %v757 = vxor.u32 %v660, 2147483648
        %v758 = vxor.u32 %v665, 2147483648
        %v759 = vxor.u32 %v670, 2147483648
        %v760 = vxor.u32 %v675, 2147483648
        %v761 = vxor.u32 %v680, 2147483648
        %v762 = vxor.u32 %v685, 2147483648
        %v763 = vxor.u32 %v690, 2147483648
        %v764 = vxor.u32 %v695, 2147483648
        %v765 = vmul.f32 %v733, 1.442695
        %v766 = vpow.pop %v765
        %v767 = vmul.f32 %v734, 1.442695
        %v768 = vpow.pop %v767
        %v769 = vmul.f32 %v735, 1.442695
        %v770 = vpow.pop %v769
        %v771 = vmul.f32 %v736, 1.442695
        %v772 = vpow.pop %v771
        %v773 = vmul.f32 %v737, 1.442695
        %v774 = vpow.pop %v773
        %v775 = vmul.f32 %v738, 1.442695
        %v776 = vpow.pop %v775
        %v777 = vmul.f32 %v739, 1.442695
        %v778 = vpow.pop %v777
        %v779 = vmul.f32 %v740, 1.442695
        %v780 = vpow.pop %v779
        %v781 = vmul.f32 %v741, 1.442695
        %v782 = vpow.pop %v781
        %v783 = vmul.f32 %v742, 1.442695
        %v784 = vpow.pop %v783
        %v785 = vmul.f32 %v743, 1.442695
        %v786 = vpow.pop %v785
        %v787 = vmul.f32 %v744, 1.442695
        %v788 = vpow.pop %v787
        %v789 = vmul.f32 %v745, 1.442695
        %v790 = vpow.pop %v789
        %v791 = vmul.f32 %v746, 1.442695
        %v792 = vpow.pop %v791
        %v793 = vmul.f32 %v747, 1.442695
        %v794 = vpow.pop %v793
        %v795 = vmul.f32 %v748, 1.442695
        %v796 = vpow.pop %v795
        %v797 = vmul.f32 %v749, 1.442695
        %v798 = vpow.pop %v797
        %v799 = vmul.f32 %v750, 1.442695
        %v800 = vpow.pop %v799
        %v801 = vmul.f32 %v751, 1.442695
        %v802 = vpow.pop %v801
        %v803 = vmul.f32 %v752, 1.442695
        %v804 = vpow.pop %v803
        %v805 = vmul.f32 %v753, 1.442695
        %v806 = vpow.pop %v805
        %v807 = vmul.f32 %v754, 1.442695
        %v808 = vpow.pop %v807
        %v809 = vmul.f32 %v755, 1.442695
        %v810 = vpow.pop %v809
        %v811 = vmul.f32 %v756, 1.442695
        %v812 = vpow.pop %v811
        %v813 = vmul.f32 %v757, 1.442695
        %v814 = vpow.pop %v813
        %v815 = vmul.f32 %v758, 1.442695
        %v816 = vpow.pop %v815
        %v817 = vmul.f32 %v759, 1.442695
        %v818 = vpow.pop %v817
        %v819 = vmul.f32 %v760, 1.442695
        %v820 = vpow.pop %v819
        %v821 = vmul.f32 %v761, 1.442695
        %v822 = vpow.pop %v821
        %v823 = vmul.f32 %v762, 1.442695
        %v824 = vpow.pop %v823
        %v825 = vmul.f32 %v763, 1.442695
        %v826 = vpow.pop %v825
        %v827 = vmul.f32 %v764, 1.442695
        %v828 = vpow.pop %v827
        %v829 = vadd.f32 %v766, 1.0
        %v830 = vadd.f32 %v768, 1.0
        %v831 = vadd.f32 %v770, 1.0
        %v832 = vadd.f32 %v772, 1.0
        %v833 = vadd.f32 %v774, 1.0
        %v834 = vadd.f32 %v776, 1.0
        %v835 = vadd.f32 %v778, 1.0
        %v836 = vadd.f32 %v780, 1.0
        %v837 = vadd.f32 %v782, 1.0
        %v838 = vadd.f32 %v784, 1.0
        %v839 = vadd.f32 %v786, 1.0
        %v840 = vadd.f32 %v788, 1.0
        %v841 = vadd.f32 %v790, 1.0
        %v842 = vadd.f32 %v792, 1.0
        %v843 = vadd.f32 %v794, 1.0
        %v844 = vadd.f32 %v796, 1.0
        %v845 = vadd.f32 %v798, 1.0
        %v846 = vadd.f32 %v800, 1.0
        %v847 = vadd.f32 %v802, 1.0
        %v848 = vadd.f32 %v804, 1.0
        %v849 = vadd.f32 %v806, 1.0
        %v850 = vadd.f32 %v808, 1.0
        %v851 = vadd.f32 %v810, 1.0
        %v852 = vadd.f32 %v812, 1.0
        %v853 = vadd.f32 %v814, 1.0
        %v854 = vadd.f32 %v816, 1.0
        %v855 = vadd.f32 %v818, 1.0
        %v856 = vadd.f32 %v820, 1.0
        %v857 = vadd.f32 %v822, 1.0
        %v858 = vadd.f32 %v824, 1.0
        %v859 = vadd.f32 %v826, 1.0
        %v860 = vadd.f32 %v828, 1.0
        %v861 = vrcp.pop %v829
        %v862 = vmul.f32 1.0, %v861
        %v863 = vrcp.pop %v830
        %v864 = vmul.f32 1.0, %v863
        %v865 = vrcp.pop %v831
        %v866 = vmul.f32 1.0, %v865
        %v867 = vrcp.pop %v832
        %v868 = vmul.f32 1.0, %v867
        %v869 = vrcp.pop %v833
        %v870 = vmul.f32 1.0, %v869
        %v871 = vrcp.pop %v834
        %v872 = vmul.f32 1.0, %v871
        %v873 = vrcp.pop %v835
        %v874 = vmul.f32 1.0, %v873
        %v875 = vrcp.pop %v836
        %v876 = vmul.f32 1.0, %v875
        %v877 = vrcp.pop %v837
        %v878 = vmul.f32 1.0, %v877
        %v879 = vrcp.pop %v838
        %v880 = vmul.f32 1.0, %v879
        %v881 = vrcp.pop %v839
        %v882 = vmul.f32 1.0, %v881
        %v883 = vrcp.pop %v840
        %v884 = vmul.f32 1.0, %v883
        %v885 = vrcp.pop %v841
        %v886 = vmul.f32 1.0, %v885
        %v887 = vrcp.pop %v842
        %v888 = vmul.f32 1.0, %v887
        %v889 = vrcp.pop %v843
        %v890 = vmul.f32 1.0, %v889
        %v891 = vrcp.pop %v844
        %v892 = vmul.f32 1.0, %v891
        %v893 = vrcp.pop %v845
        %v894 = vmul.f32 1.0, %v893
        %v895 = vrcp.pop %v846
        %v896 = vmul.f32 1.0, %v895
        %v897 = vrcp.pop %v847
        %v898 = vmul.f32 1.0, %v897
        %v899 = vrcp.pop %v848
        %v900 = vmul.f32 1.0, %v899
        %v901 = vrcp.pop %v849
        %v902 = vmul.f32 1.0, %v901
        %v903 = vrcp.pop %v850
        %v904 = vmul.f32 1.0, %v903
        %v905 = vrcp.pop %v851
        %v906 = vmul.f32 1.0, %v905
        %v907 = vrcp.pop %v852
        %v908 = vmul.f32 1.0, %v907
        %v909 = vrcp.pop %v853
        %v910 = vmul.f32 1.0, %v909
        %v911 = vrcp.pop %v854
        %v912 = vmul.f32 1.0, %v911
        %v913 = vrcp.pop %v855
        %v914 = vmul.f32 1.0, %v913
        %v915 = vrcp.pop %v856
        %v916 = vmul.f32 1.0, %v915
        %v917 = vrcp.pop %v857
        %v918 = vmul.f32 1.0, %v917
        %v919 = vrcp.pop %v858
        %v920 = vmul.f32 1.0, %v919
        %v921 = vrcp.pop %v859
        %v922 = vmul.f32 1.0, %v921
        %v923 = vrcp.pop %v860
        %v924 = vmul.f32 1.0, %v923
        %v925 = vsel %vm700, %v701, %v862
        %v926 = vsel %vm700, %v702, %v864
        %v927 = vsel %vm700, %v703, %v866
        %v928 = vsel %vm700, %v704, %v868
        %v929 = vsel %vm700, %v705, %v870
        %v930 = vsel %vm700, %v706, %v872
        %v931 = vsel %vm700, %v707, %v874
        %v932 = vsel %vm700, %v708, %v876
        %v933 = vsel %vm700, %v709, %v878
        %v934 = vsel %vm700, %v710, %v880
        %v935 = vsel %vm700, %v711, %v882
        %v936 = vsel %vm700, %v712, %v884
        %v937 = vsel %vm700, %v713, %v886
        %v938 = vsel %vm700, %v714, %v888
        %v939 = vsel %vm700, %v715, %v890
        %v940 = vsel %vm700, %v716, %v892
        %v941 = vsel %vm700, %v717, %v894
        %v942 = vsel %vm700, %v718, %v896
        %v943 = vsel %vm700, %v719, %v898
        %v944 = vsel %vm700, %v720, %v900
        %v945 = vsel %vm700, %v721, %v902
        %v946 = vsel %vm700, %v722, %v904
        %v947 = vsel %vm700, %v723, %v906
        %v948 = vsel %vm700, %v724, %v908
        %v949 = vsel %vm700, %v725, %v910
        %v950 = vsel %vm700, %v726, %v912
        %v951 = vsel %vm700, %v727, %v914
        %v952 = vsel %vm700, %v728, %v916
        %v953 = vsel %vm700, %v729, %v918
        %v954 = vsel %vm700, %v730, %v920
        %v955 = vsel %vm700, %v731, %v922
        %v956 = vsel %vm700, %v732, %v924
        %v957 = vld [vmem:[%s3] sm:$0xff]
        %v958 = vld [vmem:[%s3 + $0x8] sm:$0xff]
        %v959 = vld [vmem:[%s3 + $0x10] sm:$0xff]
        %v960 = vld [vmem:[%s3 + $0x18] sm:$0xff]
        %v961 = vld [vmem:[%s4] sm:$0x1]
        %v963 = vlaneseq
        %v964 = vshrl.u32 %v963, 7
        %v965 = vsub.s32 0, %v964
        %v966 = vrot.slane %v961, %v965
        %v969 = vsel %vm376, %v925, 0
        %v972 = vsel %vm376, %v926, 0
        %v975 = vsel %vm376, %v927, 0
        %v978 = vsel %vm376, %v928, 0
        %v981 = vsel %vm376, %v929, 0
        %v984 = vsel %vm376, %v930, 0
        %v987 = vsel %vm376, %v931, 0
        %v990 = vsel %vm376, %v932, 0
        %v993 = vsel %vm376, %v933, 0
        %v996 = vsel %vm376, %v934, 0
        %v999 = vsel %vm376, %v935, 0
        %v1002 = vsel %vm376, %v936, 0
        %v1005 = vsel %vm376, %v937, 0
        %v1008 = vsel %vm376, %v938, 0
        %v1011 = vsel %vm376, %v939, 0
        %v1014 = vsel %vm376, %v940, 0
        %v1017 = vsel %vm376, %v941, 0
        %v1020 = vsel %vm376, %v942, 0
        %v1023 = vsel %vm376, %v943, 0
        %v1026 = vsel %vm376, %v944, 0
        %v1029 = vsel %vm376, %v945, 0
        %v1032 = vsel %vm376, %v946, 0
        %v1035 = vsel %vm376, %v947, 0
        %v1038 = vsel %vm376, %v948, 0
        %v1041 = vsel %vm376, %v949, 0
        %v1044 = vsel %vm376, %v950, 0
        %v1047 = vsel %vm376, %v951, 0
        %v1050 = vsel %vm376, %v952, 0
        %v1053 = vsel %vm376, %v953, 0
        %v1056 = vsel %vm376, %v954, 0
        %v1059 = vsel %vm376, %v955, 0
        %v1062 = vsel %vm376, %v956, 0
        %1064 = vmatprep.subr.mxu0 0.0
        %1065 = vmatpush1.msra.mxu0 0.0
        %1066 = vmatprep.subr.mxu0 0.0
        %1067 = vmatpush1.msra.mxu0 0.0
        %1068 = vmatprep.subr.mxu0 0.0
        %1069 = vmatpush1.msra.mxu0 0.0
        %1070 = vmatprep.subr.mxu0 0.0
        %1071 = vmatpush1.msra.mxu0 0.0
        %1072 = vmatprep.subr.mxu0 0.0
        %1073 = vmatpush1.msra.mxu0 0.0
        %1074 = vmatprep.subr.mxu0 0.0
        %1075 = vmatpush1.msra.mxu0 0.0
        %1076 = vmatprep.subr.mxu0 0.0
        %1077 = vmatpush1.msra.mxu0 0.0
        %1078 = vmatprep.subr.mxu0 0.0
        %1079 = vmatpush1.msra.mxu0 0.0
        %1080 = vmatprep.subr.mxu0 0.0
        %1081 = vmatpush1.msra.mxu0 0.0
        %1082 = vmatprep.subr.mxu0 0.0
        %1083 = vmatpush1.msra.mxu0 0.0
        %1084 = vmatprep.subr.mxu0 0.0
        %1085 = vmatpush1.msra.mxu0 0.0
        %1086 = vmatprep.subr.mxu0 0.0
        %1087 = vmatpush1.msra.mxu0 0.0
        %1088 = vmatprep.subr.mxu0 0.0
        %1089 = vmatpush1.msra.mxu0 %v960
        %1090 = vmatprep.subr.mxu0 0.0
        %1091 = vmatpush1.msra.mxu0 %v959
        %1092 = vmatprep.subr.mxu0 0.0
        %1093 = vmatpush1.msra.mxu0 %v958
        %1094 = vmatprep.subr.mxu0 0.0
        %1095 = vmatpush1.msra.mxu0 %v957
        %1096 = vmatprep.subr.mxu0 0.0
        %1097 = vmatpush2.msra.mxu0 0.0
        %1098 = vmatprep.subr.mxu0 0.0
        %1099 = vmatpush2.msra.mxu0 0.0
        %1100 = vmatprep.subr.mxu0 0.0
        %1101 = vmatpush2.msra.mxu0 0.0
        %1102 = vmatprep.subr.mxu0 0.0
        %1103 = vmatpush2.msra.mxu0 0.0
        %1104 = vmatprep.subr.mxu0 0.0
        %1105 = vmatpush2.msra.mxu0 0.0
        %1106 = vmatprep.subr.mxu0 0.0
        %1107 = vmatpush2.msra.mxu0 0.0
        %1108 = vmatprep.subr.mxu0 0.0
        %1109 = vmatpush2.msra.mxu0 0.0
        %1110 = vmatprep.subr.mxu0 0.0
        %1111 = vmatpush2.msra.mxu0 0.0
        %1112 = vmatprep.subr.mxu0 0.0
        %1113 = vmatpush2.msra.mxu0 0.0
        %1114 = vmatprep.subr.mxu0 0.0
        %1115 = vmatpush2.msra.mxu0 0.0
        %1116 = vmatprep.subr.mxu0 0.0
        %1117 = vmatpush2.msra.mxu0 0.0
        %1118 = vmatprep.subr.mxu0 0.0
        %1119 = vmatpush2.msra.mxu0 0.0
        %1120 = vmatprep.subr.mxu0 0.0
        %1121 = vmatpush2.msra.mxu0 0.0
        %1122 = vmatprep.subr.mxu0 0.0
        %1123 = vmatpush2.msra.mxu0 0.0
        %1124 = vmatprep.subr.mxu0 0.0
        %1125 = vmatpush2.msra.mxu0 0.0
        %1126 = vmatprep.subr.mxu0 0.0
        %1127 = vmatpush2.msra.mxu0 0.0
        %1128 = vmatprep.mubr.f32.mxu0 0.0
        %1129 = vmatmul.mubr.f32.gmra.mxu0 %v969
        %v1130 = vpop.f32.mrf.mxu0
        %v1131 = vadd.f32 %v966, %v1130
        %v1132 = vpop.f32.mrf.mxu0
        %1133 = vmatprep.mubr.f32.mxu0 0.0
        %1134 = vmatmul.mubr.f32.gmra.mxu0 %v972
        %v1135 = vpop.f32.mrf.mxu0
        %v1136 = vadd.f32 %v966, %v1135
        %v1137 = vpop.f32.mrf.mxu0
        %1138 = vmatprep.mubr.f32.mxu0 0.0
        %1139 = vmatmul.mubr.f32.gmra.mxu0 %v975
        %v1140 = vpop.f32.mrf.mxu0
        %v1141 = vadd.f32 %v966, %v1140
        %v1142 = vpop.f32.mrf.mxu0
        %1143 = vmatprep.mubr.f32.mxu0 0.0
        %1144 = vmatmul.mubr.f32.gmra.mxu0 %v978
        %v1145 = vpop.f32.mrf.mxu0
        %v1146 = vadd.f32 %v966, %v1145
        %v1147 = vpop.f32.mrf.mxu0
        %1148 = vmatprep.mubr.f32.mxu0 0.0
        %1149 = vmatmul.mubr.f32.gmra.mxu0 %v981
        %v1150 = vpop.f32.mrf.mxu0
        %v1151 = vadd.f32 %v966, %v1150
        %v1152 = vpop.f32.mrf.mxu0
        %1153 = vmatprep.mubr.f32.mxu0 0.0
        %1154 = vmatmul.mubr.f32.gmra.mxu0 %v984
        %v1155 = vpop.f32.mrf.mxu0
        %v1156 = vadd.f32 %v966, %v1155
        %v1157 = vpop.f32.mrf.mxu0
        %1158 = vmatprep.mubr.f32.mxu0 0.0
        %1159 = vmatmul.mubr.f32.gmra.mxu0 %v987
        %v1160 = vpop.f32.mrf.mxu0
        %v1161 = vadd.f32 %v966, %v1160
        %v1162 = vpop.f32.mrf.mxu0
        %1163 = vmatprep.mubr.f32.mxu0 0.0
        %1164 = vmatmul.mubr.f32.gmra.mxu0 %v990
        %v1165 = vpop.f32.mrf.mxu0
        %v1166 = vadd.f32 %v966, %v1165
        %v1167 = vpop.f32.mrf.mxu0
        %1168 = vmatprep.mubr.f32.mxu0 0.0
        %1169 = vmatmul.mubr.f32.gmra.mxu0 %v993
        %v1170 = vpop.f32.mrf.mxu0
        %v1171 = vadd.f32 %v966, %v1170
        %v1172 = vpop.f32.mrf.mxu0
        %1173 = vmatprep.mubr.f32.mxu0 0.0
        %1174 = vmatmul.mubr.f32.gmra.mxu0 %v996
        %v1175 = vpop.f32.mrf.mxu0
        %v1176 = vadd.f32 %v966, %v1175
        %v1177 = vpop.f32.mrf.mxu0
        %1178 = vmatprep.mubr.f32.mxu0 0.0
        %1179 = vmatmul.mubr.f32.gmra.mxu0 %v999
        %v1180 = vpop.f32.mrf.mxu0
        %v1181 = vadd.f32 %v966, %v1180
        %v1182 = vpop.f32.mrf.mxu0
        %1183 = vmatprep.mubr.f32.mxu0 0.0
        %1184 = vmatmul.mubr.f32.gmra.mxu0 %v1002
        %v1185 = vpop.f32.mrf.mxu0
        %v1186 = vadd.f32 %v966, %v1185
        %v1187 = vpop.f32.mrf.mxu0
        %1188 = vmatprep.mubr.f32.mxu0 0.0
        %1189 = vmatmul.mubr.f32.gmra.mxu0 %v1005
        %v1190 = vpop.f32.mrf.mxu0
        %v1191 = vadd.f32 %v966, %v1190
        %v1192 = vpop.f32.mrf.mxu0
        %1193 = vmatprep.mubr.f32.mxu0 0.0
        %1194 = vmatmul.mubr.f32.gmra.mxu0 %v1008
        %v1195 = vpop.f32.mrf.mxu0
        %v1196 = vadd.f32 %v966, %v1195
        %v1197 = vpop.f32.mrf.mxu0
        %1198 = vmatprep.mubr.f32.mxu0 0.0
        %1199 = vmatmul.mubr.f32.gmra.mxu0 %v1011
        %v1200 = vpop.f32.mrf.mxu0
        %v1201 = vadd.f32 %v966, %v1200
        %v1202 = vpop.f32.mrf.mxu0
        %1203 = vmatprep.mubr.f32.mxu0 0.0
        %1204 = vmatmul.mubr.f32.gmra.mxu0 %v1014
        %v1205 = vpop.f32.mrf.mxu0
        %v1206 = vadd.f32 %v966, %v1205
        %v1207 = vpop.f32.mrf.mxu0
        %1208 = vmatprep.mubr.f32.mxu0 0.0
        %1209 = vmatmul.mubr.f32.gmra.mxu0 %v1017
        %v1210 = vpop.f32.mrf.mxu0
        %v1211 = vadd.f32 %v966, %v1210
        %v1212 = vpop.f32.mrf.mxu0
        %1213 = vmatprep.mubr.f32.mxu0 0.0
        %1214 = vmatmul.mubr.f32.gmra.mxu0 %v1020
        %v1215 = vpop.f32.mrf.mxu0
        %v1216 = vadd.f32 %v966, %v1215
        %v1217 = vpop.f32.mrf.mxu0
        %1218 = vmatprep.mubr.f32.mxu0 0.0
        %1219 = vmatmul.mubr.f32.gmra.mxu0 %v1023
        %v1220 = vpop.f32.mrf.mxu0
        %v1221 = vadd.f32 %v966, %v1220
        %v1222 = vpop.f32.mrf.mxu0
        %1223 = vmatprep.mubr.f32.mxu0 0.0
        %1224 = vmatmul.mubr.f32.gmra.mxu0 %v1026
        %v1225 = vpop.f32.mrf.mxu0
        %v1226 = vadd.f32 %v966, %v1225
        %v1227 = vpop.f32.mrf.mxu0
        %1228 = vmatprep.mubr.f32.mxu0 0.0
        %1229 = vmatmul.mubr.f32.gmra.mxu0 %v1029
        %v1230 = vpop.f32.mrf.mxu0
        %v1231 = vadd.f32 %v966, %v1230
        %v1232 = vpop.f32.mrf.mxu0
        %1233 = vmatprep.mubr.f32.mxu0 0.0
        %1234 = vmatmul.mubr.f32.gmra.mxu0 %v1032
        %v1235 = vpop.f32.mrf.mxu0
        %v1236 = vadd.f32 %v966, %v1235
        %v1237 = vpop.f32.mrf.mxu0
        %1238 = vmatprep.mubr.f32.mxu0 0.0
        %1239 = vmatmul.mubr.f32.gmra.mxu0 %v1035
        %v1240 = vpop.f32.mrf.mxu0
        %v1241 = vadd.f32 %v966, %v1240
        %v1242 = vpop.f32.mrf.mxu0
        %1243 = vmatprep.mubr.f32.mxu0 0.0
        %1244 = vmatmul.mubr.f32.gmra.mxu0 %v1038
        %v1245 = vpop.f32.mrf.mxu0
        %v1246 = vadd.f32 %v966, %v1245
        %v1247 = vpop.f32.mrf.mxu0
        %1248 = vmatprep.mubr.f32.mxu0 0.0
        %1249 = vmatmul.mubr.f32.gmra.mxu0 %v1041
        %v1250 = vpop.f32.mrf.mxu0
        %v1251 = vadd.f32 %v966, %v1250
        %v1252 = vpop.f32.mrf.mxu0
        %1253 = vmatprep.mubr.f32.mxu0 0.0
        %1254 = vmatmul.mubr.f32.gmra.mxu0 %v1044
        %v1255 = vpop.f32.mrf.mxu0
        %v1256 = vadd.f32 %v966, %v1255
        %v1257 = vpop.f32.mrf.mxu0
        %1258 = vmatprep.mubr.f32.mxu0 0.0
        %1259 = vmatmul.mubr.f32.gmra.mxu0 %v1047
        %v1260 = vpop.f32.mrf.mxu0
        %v1261 = vadd.f32 %v966, %v1260
        %v1262 = vpop.f32.mrf.mxu0
        %1263 = vmatprep.mubr.f32.mxu0 0.0
        %1264 = vmatmul.mubr.f32.gmra.mxu0 %v1050
        %v1265 = vpop.f32.mrf.mxu0
        %v1266 = vadd.f32 %v966, %v1265
        %v1267 = vpop.f32.mrf.mxu0
        %1268 = vmatprep.mubr.f32.mxu0 0.0
        %1269 = vmatmul.mubr.f32.gmra.mxu0 %v1053
        %v1270 = vpop.f32.mrf.mxu0
        %v1271 = vadd.f32 %v966, %v1270
        %v1272 = vpop.f32.mrf.mxu0
        %1273 = vmatprep.mubr.f32.mxu0 0.0
        %1274 = vmatmul.mubr.f32.gmra.mxu0 %v1056
        %v1275 = vpop.f32.mrf.mxu0
        %v1276 = vadd.f32 %v966, %v1275
        %v1277 = vpop.f32.mrf.mxu0
        %1278 = vmatprep.mubr.f32.mxu0 0.0
        %1279 = vmatmul.mubr.f32.gmra.mxu0 %v1059
        %v1280 = vpop.f32.mrf.mxu0
        %v1281 = vadd.f32 %v966, %v1280
        %v1282 = vpop.f32.mrf.mxu0
        %1283 = vmatprep.mubr.f32.mxu0 0.0
        %1284 = vmatmul.mubr.f32.gmra.mxu0 %v1062
        %v1285 = vpop.f32.mrf.mxu0
        %v1286 = vadd.f32 %v966, %v1285
        %v1287 = vpop.f32.mrf.mxu0
        %1288 = vdwg.mxu0
        %1321 = vrot.lane.b32.xlu0 %v1131, 96
        %v1322 = vpop.permute.xlu0 %1321
        %1323 = vrot.lane.b32.xlu0 %v1136, 96
        %v1324 = vpop.permute.xlu0 %1323
        %1325 = vrot.lane.b32.xlu0 %v1141, 96
        %v1326 = vpop.permute.xlu0 %1325
        %1327 = vrot.lane.b32.xlu0 %v1146, 96
        %v1328 = vpop.permute.xlu0 %1327
        %1329 = vrot.lane.b32.xlu0 %v1151, 96
        %v1330 = vpop.permute.xlu0 %1329
        %1331 = vrot.lane.b32.xlu0 %v1156, 96
        %v1332 = vpop.permute.xlu0 %1331
        %1333 = vrot.lane.b32.xlu0 %v1161, 96
        %v1334 = vpop.permute.xlu0 %1333
        %1335 = vrot.lane.b32.xlu0 %v1166, 96
        %v1336 = vpop.permute.xlu0 %1335
        %1337 = vrot.lane.b32.xlu0 %v1171, 96
        %v1338 = vpop.permute.xlu0 %1337
        %1339 = vrot.lane.b32.xlu0 %v1176, 96
        %v1340 = vpop.permute.xlu0 %1339
        %1341 = vrot.lane.b32.xlu0 %v1181, 96
        %v1342 = vpop.permute.xlu0 %1341
        %1343 = vrot.lane.b32.xlu0 %v1186, 96
        %v1344 = vpop.permute.xlu0 %1343
        %1345 = vrot.lane.b32.xlu0 %v1191, 96
        %v1346 = vpop.permute.xlu0 %1345
        %1347 = vrot.lane.b32.xlu0 %v1196, 96
        %v1348 = vpop.permute.xlu0 %1347
        %1349 = vrot.lane.b32.xlu0 %v1201, 96
        %v1350 = vpop.permute.xlu0 %1349
        %1351 = vrot.lane.b32.xlu0 %v1206, 96
        %v1352 = vpop.permute.xlu0 %1351
        %1353 = vrot.lane.b32.xlu0 %v1211, 96
        %v1354 = vpop.permute.xlu0 %1353
        %1355 = vrot.lane.b32.xlu0 %v1216, 96
        %v1356 = vpop.permute.xlu0 %1355
        %1357 = vrot.lane.b32.xlu0 %v1221, 96
        %v1358 = vpop.permute.xlu0 %1357
        %1359 = vrot.lane.b32.xlu0 %v1226, 96
        %v1360 = vpop.permute.xlu0 %1359
        %1361 = vrot.lane.b32.xlu0 %v1231, 96
        %v1362 = vpop.permute.xlu0 %1361
        %1363 = vrot.lane.b32.xlu0 %v1236, 96
        %v1364 = vpop.permute.xlu0 %1363
        %1365 = vrot.lane.b32.xlu0 %v1241, 96
        %v1366 = vpop.permute.xlu0 %1365
        %1367 = vrot.lane.b32.xlu0 %v1246, 96
        %v1368 = vpop.permute.xlu0 %1367
        %1369 = vrot.lane.b32.xlu0 %v1251, 96
        %v1370 = vpop.permute.xlu0 %1369
        %1371 = vrot.lane.b32.xlu0 %v1256, 96
        %v1372 = vpop.permute.xlu0 %1371
        %1373 = vrot.lane.b32.xlu0 %v1261, 96
        %v1374 = vpop.permute.xlu0 %1373
        %1375 = vrot.lane.b32.xlu0 %v1266, 96
        %v1376 = vpop.permute.xlu0 %1375
        %1377 = vrot.lane.b32.xlu0 %v1271, 96
        %v1378 = vpop.permute.xlu0 %1377
        %1379 = vrot.lane.b32.xlu0 %v1276, 96
        %v1380 = vpop.permute.xlu0 %1379
        %1381 = vrot.lane.b32.xlu0 %v1281, 96
        %v1382 = vpop.permute.xlu0 %1381
        %1383 = vrot.lane.b32.xlu0 %v1286, 96
        %v1384 = vpop.permute.xlu0 %1383
        %v1417 = vmul.f32 %v1131, %v1322
        %v1418 = vmul.f32 %v1136, %v1324
        %v1419 = vmul.f32 %v1141, %v1326
        %v1420 = vmul.f32 %v1146, %v1328
        %v1421 = vmul.f32 %v1151, %v1330
        %v1422 = vmul.f32 %v1156, %v1332
        %v1423 = vmul.f32 %v1161, %v1334
        %v1424 = vmul.f32 %v1166, %v1336
        %v1425 = vmul.f32 %v1171, %v1338
        %v1426 = vmul.f32 %v1176, %v1340
        %v1427 = vmul.f32 %v1181, %v1342
        %v1428 = vmul.f32 %v1186, %v1344
        %v1429 = vmul.f32 %v1191, %v1346
        %v1430 = vmul.f32 %v1196, %v1348
        %v1431 = vmul.f32 %v1201, %v1350
        %v1432 = vmul.f32 %v1206, %v1352
        %v1433 = vmul.f32 %v1211, %v1354
        %v1434 = vmul.f32 %v1216, %v1356
        %v1435 = vmul.f32 %v1221, %v1358
        %v1436 = vmul.f32 %v1226, %v1360
        %v1437 = vmul.f32 %v1231, %v1362
        %v1438 = vmul.f32 %v1236, %v1364
        %v1439 = vmul.f32 %v1241, %v1366
        %v1440 = vmul.f32 %v1246, %v1368
        %v1441 = vmul.f32 %v1251, %v1370
        %v1442 = vmul.f32 %v1256, %v1372
        %v1443 = vmul.f32 %v1261, %v1374
        %v1444 = vmul.f32 %v1266, %v1376
        %v1445 = vmul.f32 %v1271, %v1378
        %v1446 = vmul.f32 %v1276, %v1380
        %v1447 = vmul.f32 %v1281, %v1382
        %v1448 = vmul.f32 %v1286, %v1384
        %v1449 = vld [vmem:[%s5] sm:$0xff]
        %v1450 = vld [vmem:[%s5 + $0x8] sm:$0xff]
        %v1451 = vld [vmem:[%s5 + $0x10] sm:$0xff]
        %v1452 = vld [vmem:[%s5 + $0x18] sm:$0xff]
        %v1453 = vld [vmem:[%s6] sm:$0x1]
        %v1455 = vlaneseq
        %v1456 = vshrl.u32 %v1455, 7
        %v1457 = vsub.s32 0, %v1456
        %v1458 = vrot.slane %v1453, %v1457
        %v1461 = vsel %vm376, %v1417, 0
        %v1464 = vsel %vm376, %v1418, 0
        %v1467 = vsel %vm376, %v1419, 0
        %v1470 = vsel %vm376, %v1420, 0
        %v1473 = vsel %vm376, %v1421, 0
        %v1476 = vsel %vm376, %v1422, 0
        %v1479 = vsel %vm376, %v1423, 0
        %v1482 = vsel %vm376, %v1424, 0
        %v1485 = vsel %vm376, %v1425, 0
        %v1488 = vsel %vm376, %v1426, 0
        %v1491 = vsel %vm376, %v1427, 0
        %v1494 = vsel %vm376, %v1428, 0
        %v1497 = vsel %vm376, %v1429, 0
        %v1500 = vsel %vm376, %v1430, 0
        %v1503 = vsel %vm376, %v1431, 0
        %v1506 = vsel %vm376, %v1432, 0
        %v1509 = vsel %vm376, %v1433, 0
        %v1512 = vsel %vm376, %v1434, 0
        %v1515 = vsel %vm376, %v1435, 0
        %v1518 = vsel %vm376, %v1436, 0
        %v1521 = vsel %vm376, %v1437, 0
        %v1524 = vsel %vm376, %v1438, 0
        %v1527 = vsel %vm376, %v1439, 0
        %v1530 = vsel %vm376, %v1440, 0
        %v1533 = vsel %vm376, %v1441, 0
        %v1536 = vsel %vm376, %v1442, 0
        %v1539 = vsel %vm376, %v1443, 0
        %v1542 = vsel %vm376, %v1444, 0
        %v1545 = vsel %vm376, %v1445, 0
        %v1548 = vsel %vm376, %v1446, 0
        %v1551 = vsel %vm376, %v1447, 0
        %v1554 = vsel %vm376, %v1448, 0
        %1556 = vmatprep.subr.mxu0 0.0
        %1557 = vmatpush1.msra.mxu0 0.0
        %1558 = vmatprep.subr.mxu0 0.0
        %1559 = vmatpush1.msra.mxu0 0.0
        %1560 = vmatprep.subr.mxu0 0.0
        %1561 = vmatpush1.msra.mxu0 0.0
        %1562 = vmatprep.subr.mxu0 0.0
        %1563 = vmatpush1.msra.mxu0 0.0
        %1564 = vmatprep.subr.mxu0 0.0
        %1565 = vmatpush1.msra.mxu0 0.0
        %1566 = vmatprep.subr.mxu0 0.0
        %1567 = vmatpush1.msra.mxu0 0.0
        %1568 = vmatprep.subr.mxu0 0.0
        %1569 = vmatpush1.msra.mxu0 0.0
        %1570 = vmatprep.subr.mxu0 0.0
        %1571 = vmatpush1.msra.mxu0 0.0
        %1572 = vmatprep.subr.mxu0 0.0
        %1573 = vmatpush1.msra.mxu0 0.0
        %1574 = vmatprep.subr.mxu0 0.0
        %1575 = vmatpush1.msra.mxu0 0.0
        %1576 = vmatprep.subr.mxu0 0.0
        %1577 = vmatpush1.msra.mxu0 0.0
        %1578 = vmatprep.subr.mxu0 0.0
        %1579 = vmatpush1.msra.mxu0 0.0
        %1580 = vmatprep.subr.mxu0 0.0
        %1581 = vmatpush1.msra.mxu0 %v1452
        %1582 = vmatprep.subr.mxu0 0.0
        %1583 = vmatpush1.msra.mxu0 %v1451
        %1584 = vmatprep.subr.mxu0 0.0
        %1585 = vmatpush1.msra.mxu0 %v1450
        %1586 = vmatprep.subr.mxu0 0.0
        %1587 = vmatpush1.msra.mxu0 %v1449
        %1588 = vmatprep.subr.mxu0 0.0
        %1589 = vmatpush2.msra.mxu0 0.0
        %1590 = vmatprep.subr.mxu0 0.0
        %1591 = vmatpush2.msra.mxu0 0.0
        %1592 = vmatprep.subr.mxu0 0.0
        %1593 = vmatpush2.msra.mxu0 0.0
        %1594 = vmatprep.subr.mxu0 0.0
        %1595 = vmatpush2.msra.mxu0 0.0
        %1596 = vmatprep.subr.mxu0 0.0
        %1597 = vmatpush2.msra.mxu0 0.0
        %1598 = vmatprep.subr.mxu0 0.0
        %1599 = vmatpush2.msra.mxu0 0.0
        %1600 = vmatprep.subr.mxu0 0.0
        %1601 = vmatpush2.msra.mxu0 0.0
        %1602 = vmatprep.subr.mxu0 0.0
        %1603 = vmatpush2.msra.mxu0 0.0
        %1604 = vmatprep.subr.mxu0 0.0
        %1605 = vmatpush2.msra.mxu0 0.0
        %1606 = vmatprep.subr.mxu0 0.0
        %1607 = vmatpush2.msra.mxu0 0.0
        %1608 = vmatprep.subr.mxu0 0.0
        %1609 = vmatpush2.msra.mxu0 0.0
        %1610 = vmatprep.subr.mxu0 0.0
        %1611 = vmatpush2.msra.mxu0 0.0
        %1612 = vmatprep.subr.mxu0 0.0
        %1613 = vmatpush2.msra.mxu0 0.0
        %1614 = vmatprep.subr.mxu0 0.0
        %1615 = vmatpush2.msra.mxu0 0.0
        %1616 = vmatprep.subr.mxu0 0.0
        %1617 = vmatpush2.msra.mxu0 0.0
        %1618 = vmatprep.subr.mxu0 0.0
        %1619 = vmatpush2.msra.mxu0 0.0
        %1620 = vmatprep.mubr.f32.mxu0 0.0
        %1621 = vmatmul.mubr.f32.gmra.mxu0 %v1461
        %v1622 = vpop.f32.mrf.mxu0
        %v1623 = vadd.f32 %v1458, %v1622
        %v1624 = vpop.f32.mrf.mxu0
        %1625 = vmatprep.mubr.f32.mxu0 0.0
        %1626 = vmatmul.mubr.f32.gmra.mxu0 %v1464
        %v1627 = vpop.f32.mrf.mxu0
        %v1628 = vadd.f32 %v1458, %v1627
        %v1629 = vpop.f32.mrf.mxu0
        %1630 = vmatprep.mubr.f32.mxu0 0.0
        %1631 = vmatmul.mubr.f32.gmra.mxu0 %v1467
        %v1632 = vpop.f32.mrf.mxu0
        %v1633 = vadd.f32 %v1458, %v1632
        %v1634 = vpop.f32.mrf.mxu0
        %1635 = vmatprep.mubr.f32.mxu0 0.0
        %1636 = vmatmul.mubr.f32.gmra.mxu0 %v1470
        %v1637 = vpop.f32.mrf.mxu0
        %v1638 = vadd.f32 %v1458, %v1637
        %v1639 = vpop.f32.mrf.mxu0
        %1640 = vmatprep.mubr.f32.mxu0 0.0
        %1641 = vmatmul.mubr.f32.gmra.mxu0 %v1473
        %v1642 = vpop.f32.mrf.mxu0
        %v1643 = vadd.f32 %v1458, %v1642
        %v1644 = vpop.f32.mrf.mxu0
        %1645 = vmatprep.mubr.f32.mxu0 0.0
        %1646 = vmatmul.mubr.f32.gmra.mxu0 %v1476
        %v1647 = vpop.f32.mrf.mxu0
        %v1648 = vadd.f32 %v1458, %v1647
        %v1649 = vpop.f32.mrf.mxu0
        %1650 = vmatprep.mubr.f32.mxu0 0.0
        %1651 = vmatmul.mubr.f32.gmra.mxu0 %v1479
        %v1652 = vpop.f32.mrf.mxu0
        %v1653 = vadd.f32 %v1458, %v1652
        %v1654 = vpop.f32.mrf.mxu0
        %1655 = vmatprep.mubr.f32.mxu0 0.0
        %1656 = vmatmul.mubr.f32.gmra.mxu0 %v1482
        %v1657 = vpop.f32.mrf.mxu0
        %v1658 = vadd.f32 %v1458, %v1657
        %v1659 = vpop.f32.mrf.mxu0
        %1660 = vmatprep.mubr.f32.mxu0 0.0
        %1661 = vmatmul.mubr.f32.gmra.mxu0 %v1485
        %v1662 = vpop.f32.mrf.mxu0
        %v1663 = vadd.f32 %v1458, %v1662
        %v1664 = vpop.f32.mrf.mxu0
        %1665 = vmatprep.mubr.f32.mxu0 0.0
        %1666 = vmatmul.mubr.f32.gmra.mxu0 %v1488
        %v1667 = vpop.f32.mrf.mxu0
        %v1668 = vadd.f32 %v1458, %v1667
        %v1669 = vpop.f32.mrf.mxu0
        %1670 = vmatprep.mubr.f32.mxu0 0.0
        %1671 = vmatmul.mubr.f32.gmra.mxu0 %v1491
        %v1672 = vpop.f32.mrf.mxu0
        %v1673 = vadd.f32 %v1458, %v1672
        %v1674 = vpop.f32.mrf.mxu0
        %1675 = vmatprep.mubr.f32.mxu0 0.0
        %1676 = vmatmul.mubr.f32.gmra.mxu0 %v1494
        %v1677 = vpop.f32.mrf.mxu0
        %v1678 = vadd.f32 %v1458, %v1677
        %v1679 = vpop.f32.mrf.mxu0
        %1680 = vmatprep.mubr.f32.mxu0 0.0
        %1681 = vmatmul.mubr.f32.gmra.mxu0 %v1497
        %v1682 = vpop.f32.mrf.mxu0
        %v1683 = vadd.f32 %v1458, %v1682
        %v1684 = vpop.f32.mrf.mxu0
        %1685 = vmatprep.mubr.f32.mxu0 0.0
        %1686 = vmatmul.mubr.f32.gmra.mxu0 %v1500
        %v1687 = vpop.f32.mrf.mxu0
        %v1688 = vadd.f32 %v1458, %v1687
        %v1689 = vpop.f32.mrf.mxu0
        %1690 = vmatprep.mubr.f32.mxu0 0.0
        %1691 = vmatmul.mubr.f32.gmra.mxu0 %v1503
        %v1692 = vpop.f32.mrf.mxu0
        %v1693 = vadd.f32 %v1458, %v1692
        %v1694 = vpop.f32.mrf.mxu0
        %1695 = vmatprep.mubr.f32.mxu0 0.0
        %1696 = vmatmul.mubr.f32.gmra.mxu0 %v1506
        %v1697 = vpop.f32.mrf.mxu0
        %v1698 = vadd.f32 %v1458, %v1697
        %v1699 = vpop.f32.mrf.mxu0
        %1700 = vmatprep.mubr.f32.mxu0 0.0
        %1701 = vmatmul.mubr.f32.gmra.mxu0 %v1509
        %v1702 = vpop.f32.mrf.mxu0
        %v1703 = vadd.f32 %v1458, %v1702
        %v1704 = vpop.f32.mrf.mxu0
        %1705 = vmatprep.mubr.f32.mxu0 0.0
        %1706 = vmatmul.mubr.f32.gmra.mxu0 %v1512
        %v1707 = vpop.f32.mrf.mxu0
        %v1708 = vadd.f32 %v1458, %v1707
        %v1709 = vpop.f32.mrf.mxu0
        %1710 = vmatprep.mubr.f32.mxu0 0.0
        %1711 = vmatmul.mubr.f32.gmra.mxu0 %v1515
        %v1712 = vpop.f32.mrf.mxu0
        %v1713 = vadd.f32 %v1458, %v1712
        %v1714 = vpop.f32.mrf.mxu0
        %1715 = vmatprep.mubr.f32.mxu0 0.0
        %1716 = vmatmul.mubr.f32.gmra.mxu0 %v1518
        %v1717 = vpop.f32.mrf.mxu0
        %v1718 = vadd.f32 %v1458, %v1717
        %v1719 = vpop.f32.mrf.mxu0
        %1720 = vmatprep.mubr.f32.mxu0 0.0
        %1721 = vmatmul.mubr.f32.gmra.mxu0 %v1521
        %v1722 = vpop.f32.mrf.mxu0
        %v1723 = vadd.f32 %v1458, %v1722
        %v1724 = vpop.f32.mrf.mxu0
        %1725 = vmatprep.mubr.f32.mxu0 0.0
        %1726 = vmatmul.mubr.f32.gmra.mxu0 %v1524
        %v1727 = vpop.f32.mrf.mxu0
        %v1728 = vadd.f32 %v1458, %v1727
        %v1729 = vpop.f32.mrf.mxu0
        %1730 = vmatprep.mubr.f32.mxu0 0.0
        %1731 = vmatmul.mubr.f32.gmra.mxu0 %v1527
        %v1732 = vpop.f32.mrf.mxu0
        %v1733 = vadd.f32 %v1458, %v1732
        %v1734 = vpop.f32.mrf.mxu0
        %1735 = vmatprep.mubr.f32.mxu0 0.0
        %1736 = vmatmul.mubr.f32.gmra.mxu0 %v1530
        %v1737 = vpop.f32.mrf.mxu0
        %v1738 = vadd.f32 %v1458, %v1737
        %v1739 = vpop.f32.mrf.mxu0
        %1740 = vmatprep.mubr.f32.mxu0 0.0
        %1741 = vmatmul.mubr.f32.gmra.mxu0 %v1533
        %v1742 = vpop.f32.mrf.mxu0
        %v1743 = vadd.f32 %v1458, %v1742
        %v1744 = vpop.f32.mrf.mxu0
        %1745 = vmatprep.mubr.f32.mxu0 0.0
        %1746 = vmatmul.mubr.f32.gmra.mxu0 %v1536
        %v1747 = vpop.f32.mrf.mxu0
        %v1748 = vadd.f32 %v1458, %v1747
        %v1749 = vpop.f32.mrf.mxu0
        %1750 = vmatprep.mubr.f32.mxu0 0.0
        %1751 = vmatmul.mubr.f32.gmra.mxu0 %v1539
        %v1752 = vpop.f32.mrf.mxu0
        %v1753 = vadd.f32 %v1458, %v1752
        %v1754 = vpop.f32.mrf.mxu0
        %1755 = vmatprep.mubr.f32.mxu0 0.0
        %1756 = vmatmul.mubr.f32.gmra.mxu0 %v1542
        %v1757 = vpop.f32.mrf.mxu0
        %v1758 = vadd.f32 %v1458, %v1757
        %v1759 = vpop.f32.mrf.mxu0
        %1760 = vmatprep.mubr.f32.mxu0 0.0
        %1761 = vmatmul.mubr.f32.gmra.mxu0 %v1545
        %v1762 = vpop.f32.mrf.mxu0
        %v1763 = vadd.f32 %v1458, %v1762
        %v1764 = vpop.f32.mrf.mxu0
        %1765 = vmatprep.mubr.f32.mxu0 0.0
        %1766 = vmatmul.mubr.f32.gmra.mxu0 %v1548
        %v1767 = vpop.f32.mrf.mxu0
        %v1768 = vadd.f32 %v1458, %v1767
        %v1769 = vpop.f32.mrf.mxu0
        %1770 = vmatprep.mubr.f32.mxu0 0.0
        %1771 = vmatmul.mubr.f32.gmra.mxu0 %v1551
        %v1772 = vpop.f32.mrf.mxu0
        %v1773 = vadd.f32 %v1458, %v1772
        %v1774 = vpop.f32.mrf.mxu0
        %1775 = vmatprep.mubr.f32.mxu0 0.0
        %1776 = vmatmul.mubr.f32.gmra.mxu0 %v1554
        %v1777 = vpop.f32.mrf.mxu0
        %v1778 = vadd.f32 %v1458, %v1777
        %v1779 = vpop.f32.mrf.mxu0
        %1780 = vdwg.mxu0
        %v1781 = vmax.f32 %v1623, 0.0
        %v1782 = vmax.f32 %v1628, 0.0
        %v1783 = vmax.f32 %v1633, 0.0
        %v1784 = vmax.f32 %v1638, 0.0
        %v1785 = vmax.f32 %v1643, 0.0
        %v1786 = vmax.f32 %v1648, 0.0
        %v1787 = vmax.f32 %v1653, 0.0
        %v1788 = vmax.f32 %v1658, 0.0
        %v1789 = vmax.f32 %v1663, 0.0
        %v1790 = vmax.f32 %v1668, 0.0
        %v1791 = vmax.f32 %v1673, 0.0
        %v1792 = vmax.f32 %v1678, 0.0
        %v1793 = vmax.f32 %v1683, 0.0
        %v1794 = vmax.f32 %v1688, 0.0
        %v1795 = vmax.f32 %v1693, 0.0
        %v1796 = vmax.f32 %v1698, 0.0
        %v1797 = vmax.f32 %v1703, 0.0
        %v1798 = vmax.f32 %v1708, 0.0
        %v1799 = vmax.f32 %v1713, 0.0
        %v1800 = vmax.f32 %v1718, 0.0
        %v1801 = vmax.f32 %v1723, 0.0
        %v1802 = vmax.f32 %v1728, 0.0
        %v1803 = vmax.f32 %v1733, 0.0
        %v1804 = vmax.f32 %v1738, 0.0
        %v1805 = vmax.f32 %v1743, 0.0
        %v1806 = vmax.f32 %v1748, 0.0
        %v1807 = vmax.f32 %v1753, 0.0
        %v1808 = vmax.f32 %v1758, 0.0
        %v1809 = vmax.f32 %v1763, 0.0
        %v1810 = vmax.f32 %v1768, 0.0
        %v1811 = vmax.f32 %v1773, 0.0
        %v1812 = vmax.f32 %v1778, 0.0
        %v1813 = vld [vmem:[%s7] sm:$0xff]
        %v1814 = vld [vmem:[%s8] sm:$0x1]
        %v1816 = vlaneseq
        %v1817 = vshrl.u32 %v1816, 7
        %v1818 = vsub.s32 0, %v1817
        %v1819 = vrot.slane %v1814, %v1818
        %vm1821 = vcmask 64512
        %v1823 = vsel %vm1821, %v1781, 0
        %v1826 = vsel %vm1821, %v1782, 0
        %v1829 = vsel %vm1821, %v1783, 0
        %v1832 = vsel %vm1821, %v1784, 0
        %v1835 = vsel %vm1821, %v1785, 0
        %v1838 = vsel %vm1821, %v1786, 0
        %v1841 = vsel %vm1821, %v1787, 0
        %v1844 = vsel %vm1821, %v1788, 0
        %v1847 = vsel %vm1821, %v1789, 0
        %v1850 = vsel %vm1821, %v1790, 0
        %v1853 = vsel %vm1821, %v1791, 0
        %v1856 = vsel %vm1821, %v1792, 0
        %v1859 = vsel %vm1821, %v1793, 0
        %v1862 = vsel %vm1821, %v1794, 0
        %v1865 = vsel %vm1821, %v1795, 0
        %v1868 = vsel %vm1821, %v1796, 0
        %v1871 = vsel %vm1821, %v1797, 0
        %v1874 = vsel %vm1821, %v1798, 0
        %v1877 = vsel %vm1821, %v1799, 0
        %v1880 = vsel %vm1821, %v1800, 0
        %v1883 = vsel %vm1821, %v1801, 0
        %v1886 = vsel %vm1821, %v1802, 0
        %v1889 = vsel %vm1821, %v1803, 0
        %v1892 = vsel %vm1821, %v1804, 0
        %v1895 = vsel %vm1821, %v1805, 0
        %v1898 = vsel %vm1821, %v1806, 0
        %v1901 = vsel %vm1821, %v1807, 0
        %v1904 = vsel %vm1821, %v1808, 0
        %v1907 = vsel %vm1821, %v1809, 0
        %v1910 = vsel %vm1821, %v1810, 0
        %v1913 = vsel %vm1821, %v1811, 0
        %v1916 = vsel %vm1821, %v1812, 0
        %1918 = vmatprep.subr.mxu0 0.0
        %1919 = vmatpush1.msra.mxu0 0.0
        %1920 = vmatprep.subr.mxu0 0.0
        %1921 = vmatpush1.msra.mxu0 0.0
        %1922 = vmatprep.subr.mxu0 0.0
        %1923 = vmatpush1.msra.mxu0 0.0
        %1924 = vmatprep.subr.mxu0 0.0
        %1925 = vmatpush1.msra.mxu0 0.0
        %1926 = vmatprep.subr.mxu0 0.0
        %1927 = vmatpush1.msra.mxu0 0.0
        %1928 = vmatprep.subr.mxu0 0.0
        %1929 = vmatpush1.msra.mxu0 0.0
        %1930 = vmatprep.subr.mxu0 0.0
        %1931 = vmatpush1.msra.mxu0 0.0
        %1932 = vmatprep.subr.mxu0 0.0
        %1933 = vmatpush1.msra.mxu0 0.0
        %1934 = vmatprep.subr.mxu0 0.0
        %1935 = vmatpush1.msra.mxu0 0.0
        %1936 = vmatprep.subr.mxu0 0.0
        %1937 = vmatpush1.msra.mxu0 0.0
        %1938 = vmatprep.subr.mxu0 0.0
        %1939 = vmatpush1.msra.mxu0 0.0
        %1940 = vmatprep.subr.mxu0 0.0
        %1941 = vmatpush1.msra.mxu0 0.0
        %1942 = vmatprep.subr.mxu0 0.0
        %1943 = vmatpush1.msra.mxu0 0.0
        %1944 = vmatprep.subr.mxu0 0.0
        %1945 = vmatpush1.msra.mxu0 0.0
        %1946 = vmatprep.subr.mxu0 0.0
        %1947 = vmatpush1.msra.mxu0 0.0
        %1948 = vmatprep.subr.mxu0 0.0
        %1949 = vmatpush1.msra.mxu0 %v1813
        %1950 = vmatprep.subr.mxu0 0.0
        %1951 = vmatpush2.msra.mxu0 0.0
        %1952 = vmatprep.subr.mxu0 0.0
        %1953 = vmatpush2.msra.mxu0 0.0
        %1954 = vmatprep.subr.mxu0 0.0
        %1955 = vmatpush2.msra.mxu0 0.0
        %1956 = vmatprep.subr.mxu0 0.0
        %1957 = vmatpush2.msra.mxu0 0.0
        %1958 = vmatprep.subr.mxu0 0.0
        %1959 = vmatpush2.msra.mxu0 0.0
        %1960 = vmatprep.subr.mxu0 0.0
        %1961 = vmatpush2.msra.mxu0 0.0
        %1962 = vmatprep.subr.mxu0 0.0
        %1963 = vmatpush2.msra.mxu0 0.0
        %1964 = vmatprep.subr.mxu0 0.0
        %1965 = vmatpush2.msra.mxu0 0.0
        %1966 = vmatprep.subr.mxu0 0.0
        %1967 = vmatpush2.msra.mxu0 0.0
        %1968 = vmatprep.subr.mxu0 0.0
        %1969 = vmatpush2.msra.mxu0 0.0
        %1970 = vmatprep.subr.mxu0 0.0
        %1971 = vmatpush2.msra.mxu0 0.0
        %1972 = vmatprep.subr.mxu0 0.0
        %1973 = vmatpush2.msra.mxu0 0.0
        %1974 = vmatprep.subr.mxu0 0.0
        %1975 = vmatpush2.msra.mxu0 0.0
        %1976 = vmatprep.subr.mxu0 0.0
        %1977 = vmatpush2.msra.mxu0 0.0
        %1978 = vmatprep.subr.mxu0 0.0
        %1979 = vmatpush2.msra.mxu0 0.0
        %1980 = vmatprep.subr.mxu0 0.0
        %1981 = vmatpush2.msra.mxu0 0.0
        %1982 = vmatprep.mubr.f32.mxu0 0.0
        %1983 = vmatmul.mubr.f32.gmra.mxu0 %v1823
        %v1984 = vpop.f32.mrf.mxu0
        %v1985 = vadd.f32 %v1819, %v1984
        %v1986 = vpop.f32.mrf.mxu0
        %1987 = vmatprep.mubr.f32.mxu0 0.0
        %1988 = vmatmul.mubr.f32.gmra.mxu0 %v1826
        %v1989 = vpop.f32.mrf.mxu0
        %v1990 = vadd.f32 %v1819, %v1989
        %v1991 = vpop.f32.mrf.mxu0
        %1992 = vmatprep.mubr.f32.mxu0 0.0
        %1993 = vmatmul.mubr.f32.gmra.mxu0 %v1829
        %v1994 = vpop.f32.mrf.mxu0
        %v1995 = vadd.f32 %v1819, %v1994
        %v1996 = vpop.f32.mrf.mxu0
        %1997 = vmatprep.mubr.f32.mxu0 0.0
        %1998 = vmatmul.mubr.f32.gmra.mxu0 %v1832
        %v1999 = vpop.f32.mrf.mxu0
        %v2000 = vadd.f32 %v1819, %v1999
        %v2001 = vpop.f32.mrf.mxu0
        %2002 = vmatprep.mubr.f32.mxu0 0.0
        %2003 = vmatmul.mubr.f32.gmra.mxu0 %v1835
        %v2004 = vpop.f32.mrf.mxu0
        %v2005 = vadd.f32 %v1819, %v2004
        %v2006 = vpop.f32.mrf.mxu0
        %2007 = vmatprep.mubr.f32.mxu0 0.0
        %2008 = vmatmul.mubr.f32.gmra.mxu0 %v1838
        %v2009 = vpop.f32.mrf.mxu0
        %v2010 = vadd.f32 %v1819, %v2009
        %v2011 = vpop.f32.mrf.mxu0
        %2012 = vmatprep.mubr.f32.mxu0 0.0
        %2013 = vmatmul.mubr.f32.gmra.mxu0 %v1841
        %v2014 = vpop.f32.mrf.mxu0
        %v2015 = vadd.f32 %v1819, %v2014
        %v2016 = vpop.f32.mrf.mxu0
        %2017 = vmatprep.mubr.f32.mxu0 0.0
        %2018 = vmatmul.mubr.f32.gmra.mxu0 %v1844
        %v2019 = vpop.f32.mrf.mxu0
        %v2020 = vadd.f32 %v1819, %v2019
        %v2021 = vpop.f32.mrf.mxu0
        %2022 = vmatprep.mubr.f32.mxu0 0.0
        %2023 = vmatmul.mubr.f32.gmra.mxu0 %v1847
        %v2024 = vpop.f32.mrf.mxu0
        %v2025 = vadd.f32 %v1819, %v2024
        %v2026 = vpop.f32.mrf.mxu0
        %2027 = vmatprep.mubr.f32.mxu0 0.0
        %2028 = vmatmul.mubr.f32.gmra.mxu0 %v1850
        %v2029 = vpop.f32.mrf.mxu0
        %v2030 = vadd.f32 %v1819, %v2029
        %v2031 = vpop.f32.mrf.mxu0
        %2032 = vmatprep.mubr.f32.mxu0 0.0
        %2033 = vmatmul.mubr.f32.gmra.mxu0 %v1853
        %v2034 = vpop.f32.mrf.mxu0
        %v2035 = vadd.f32 %v1819, %v2034
        %v2036 = vpop.f32.mrf.mxu0
        %2037 = vmatprep.mubr.f32.mxu0 0.0
        %2038 = vmatmul.mubr.f32.gmra.mxu0 %v1856
        %v2039 = vpop.f32.mrf.mxu0
        %v2040 = vadd.f32 %v1819, %v2039
        %v2041 = vpop.f32.mrf.mxu0
        %2042 = vmatprep.mubr.f32.mxu0 0.0
        %2043 = vmatmul.mubr.f32.gmra.mxu0 %v1859
        %v2044 = vpop.f32.mrf.mxu0
        %v2045 = vadd.f32 %v1819, %v2044
        %v2046 = vpop.f32.mrf.mxu0
        %2047 = vmatprep.mubr.f32.mxu0 0.0
        %2048 = vmatmul.mubr.f32.gmra.mxu0 %v1862
        %v2049 = vpop.f32.mrf.mxu0
        %v2050 = vadd.f32 %v1819, %v2049
        %v2051 = vpop.f32.mrf.mxu0
        %2052 = vmatprep.mubr.f32.mxu0 0.0
        %2053 = vmatmul.mubr.f32.gmra.mxu0 %v1865
        %v2054 = vpop.f32.mrf.mxu0
        %v2055 = vadd.f32 %v1819, %v2054
        %v2056 = vpop.f32.mrf.mxu0
        %2057 = vmatprep.mubr.f32.mxu0 0.0
        %2058 = vmatmul.mubr.f32.gmra.mxu0 %v1868
        %v2059 = vpop.f32.mrf.mxu0
        %v2060 = vadd.f32 %v1819, %v2059
        %v2061 = vpop.f32.mrf.mxu0
        %2062 = vmatprep.mubr.f32.mxu0 0.0
        %2063 = vmatmul.mubr.f32.gmra.mxu0 %v1871
        %v2064 = vpop.f32.mrf.mxu0
        %v2065 = vadd.f32 %v1819, %v2064
        %v2066 = vpop.f32.mrf.mxu0
        %2067 = vmatprep.mubr.f32.mxu0 0.0
        %2068 = vmatmul.mubr.f32.gmra.mxu0 %v1874
        %v2069 = vpop.f32.mrf.mxu0
        %v2070 = vadd.f32 %v1819, %v2069
        %v2071 = vpop.f32.mrf.mxu0
        %2072 = vmatprep.mubr.f32.mxu0 0.0
        %2073 = vmatmul.mubr.f32.gmra.mxu0 %v1877
        %v2074 = vpop.f32.mrf.mxu0
        %v2075 = vadd.f32 %v1819, %v2074
        %v2076 = vpop.f32.mrf.mxu0
        %2077 = vmatprep.mubr.f32.mxu0 0.0
        %2078 = vmatmul.mubr.f32.gmra.mxu0 %v1880
        %v2079 = vpop.f32.mrf.mxu0
        %v2080 = vadd.f32 %v1819, %v2079
        %v2081 = vpop.f32.mrf.mxu0
        %2082 = vmatprep.mubr.f32.mxu0 0.0
        %2083 = vmatmul.mubr.f32.gmra.mxu0 %v1883
        %v2084 = vpop.f32.mrf.mxu0
        %v2085 = vadd.f32 %v1819, %v2084
        %v2086 = vpop.f32.mrf.mxu0
        %2087 = vmatprep.mubr.f32.mxu0 0.0
        %2088 = vmatmul.mubr.f32.gmra.mxu0 %v1886
        %v2089 = vpop.f32.mrf.mxu0
        %v2090 = vadd.f32 %v1819, %v2089
        %v2091 = vpop.f32.mrf.mxu0
        %2092 = vmatprep.mubr.f32.mxu0 0.0
        %2093 = vmatmul.mubr.f32.gmra.mxu0 %v1889
        %v2094 = vpop.f32.mrf.mxu0
        %v2095 = vadd.f32 %v1819, %v2094
        %v2096 = vpop.f32.mrf.mxu0
        %2097 = vmatprep.mubr.f32.mxu0 0.0
        %2098 = vmatmul.mubr.f32.gmra.mxu0 %v1892
        %v2099 = vpop.f32.mrf.mxu0
        %v2100 = vadd.f32 %v1819, %v2099
        %v2101 = vpop.f32.mrf.mxu0
        %2102 = vmatprep.mubr.f32.mxu0 0.0
        %2103 = vmatmul.mubr.f32.gmra.mxu0 %v1895
        %v2104 = vpop.f32.mrf.mxu0
        %v2105 = vadd.f32 %v1819, %v2104
        %v2106 = vpop.f32.mrf.mxu0
        %2107 = vmatprep.mubr.f32.mxu0 0.0
        %2108 = vmatmul.mubr.f32.gmra.mxu0 %v1898
        %v2109 = vpop.f32.mrf.mxu0
        %v2110 = vadd.f32 %v1819, %v2109
        %v2111 = vpop.f32.mrf.mxu0
        %2112 = vmatprep.mubr.f32.mxu0 0.0
        %2113 = vmatmul.mubr.f32.gmra.mxu0 %v1901
        %v2114 = vpop.f32.mrf.mxu0
        %v2115 = vadd.f32 %v1819, %v2114
        %v2116 = vpop.f32.mrf.mxu0
        %2117 = vmatprep.mubr.f32.mxu0 0.0
        %2118 = vmatmul.mubr.f32.gmra.mxu0 %v1904
        %v2119 = vpop.f32.mrf.mxu0
        %v2120 = vadd.f32 %v1819, %v2119
        %v2121 = vpop.f32.mrf.mxu0
        %2122 = vmatprep.mubr.f32.mxu0 0.0
        %2123 = vmatmul.mubr.f32.gmra.mxu0 %v1907
        %v2124 = vpop.f32.mrf.mxu0
        %v2125 = vadd.f32 %v1819, %v2124
        %v2126 = vpop.f32.mrf.mxu0
        %2127 = vmatprep.mubr.f32.mxu0 0.0
        %2128 = vmatmul.mubr.f32.gmra.mxu0 %v1910
        %v2129 = vpop.f32.mrf.mxu0
        %v2130 = vadd.f32 %v1819, %v2129
        %v2131 = vpop.f32.mrf.mxu0
        %2132 = vmatprep.mubr.f32.mxu0 0.0
        %2133 = vmatmul.mubr.f32.gmra.mxu0 %v1913
        %v2134 = vpop.f32.mrf.mxu0
        %v2135 = vadd.f32 %v1819, %v2134
        %v2136 = vpop.f32.mrf.mxu0
        %2137 = vmatprep.mubr.f32.mxu0 0.0
        %2138 = vmatmul.mubr.f32.gmra.mxu0 %v1916
        %v2139 = vpop.f32.mrf.mxu0
        %v2140 = vadd.f32 %v1819, %v2139
        %v2141 = vpop.f32.mrf.mxu0
        %2142 = vdwg.mxu0
        %v2143 = vsel %vm376, %v1985, -inf
        %v2144 = vrot.slane %v2143, 4
        %v2145 = vmax.f32 %v2143, %v2144
        %v2146 = vrot.slane %v2145, 2
        %v2147 = vmax.f32 %v2145, %v2146
        %v2148 = vrot.slane %v2147, 1
        %v2149 = vmax.f32 %v2147, %v2148
        %v2150 = vsel %vm376, %v1990, -inf
        %v2151 = vrot.slane %v2150, 4
        %v2152 = vmax.f32 %v2150, %v2151
        %v2153 = vrot.slane %v2152, 2
        %v2154 = vmax.f32 %v2152, %v2153
        %v2155 = vrot.slane %v2154, 1
        %v2156 = vmax.f32 %v2154, %v2155
        %v2157 = vsel %vm376, %v1995, -inf
        %v2158 = vrot.slane %v2157, 4
        %v2159 = vmax.f32 %v2157, %v2158
        %v2160 = vrot.slane %v2159, 2
        %v2161 = vmax.f32 %v2159, %v2160
        %v2162 = vrot.slane %v2161, 1
        %v2163 = vmax.f32 %v2161, %v2162
        %v2164 = vsel %vm376, %v2000, -inf
        %v2165 = vrot.slane %v2164, 4
        %v2166 = vmax.f32 %v2164, %v2165
        %v2167 = vrot.slane %v2166, 2
        %v2168 = vmax.f32 %v2166, %v2167
        %v2169 = vrot.slane %v2168, 1
        %v2170 = vmax.f32 %v2168, %v2169
        %v2171 = vsel %vm376, %v2005, -inf
        %v2172 = vrot.slane %v2171, 4
        %v2173 = vmax.f32 %v2171, %v2172
        %v2174 = vrot.slane %v2173, 2
        %v2175 = vmax.f32 %v2173, %v2174
        %v2176 = vrot.slane %v2175, 1
        %v2177 = vmax.f32 %v2175, %v2176
        %v2178 = vsel %vm376, %v2010, -inf
        %v2179 = vrot.slane %v2178, 4
        %v2180 = vmax.f32 %v2178, %v2179
        %v2181 = vrot.slane %v2180, 2
        %v2182 = vmax.f32 %v2180, %v2181
        %v2183 = vrot.slane %v2182, 1
        %v2184 = vmax.f32 %v2182, %v2183
        %v2185 = vsel %vm376, %v2015, -inf
        %v2186 = vrot.slane %v2185, 4
        %v2187 = vmax.f32 %v2185, %v2186
        %v2188 = vrot.slane %v2187, 2
        %v2189 = vmax.f32 %v2187, %v2188
        %v2190 = vrot.slane %v2189, 1
        %v2191 = vmax.f32 %v2189, %v2190
        %v2192 = vsel %vm376, %v2020, -inf
        %v2193 = vrot.slane %v2192, 4
        %v2194 = vmax.f32 %v2192, %v2193
        %v2195 = vrot.slane %v2194, 2
        %v2196 = vmax.f32 %v2194, %v2195
        %v2197 = vrot.slane %v2196, 1
        %v2198 = vmax.f32 %v2196, %v2197
        %v2199 = vsel %vm376, %v2025, -inf
        %v2200 = vrot.slane %v2199, 4
        %v2201 = vmax.f32 %v2199, %v2200
        %v2202 = vrot.slane %v2201, 2
        %v2203 = vmax.f32 %v2201, %v2202
        %v2204 = vrot.slane %v2203, 1
        %v2205 = vmax.f32 %v2203, %v2204
        %v2206 = vsel %vm376, %v2030, -inf
        %v2207 = vrot.slane %v2206, 4
        %v2208 = vmax.f32 %v2206, %v2207
        %v2209 = vrot.slane %v2208, 2
        %v2210 = vmax.f32 %v2208, %v2209
        %v2211 = vrot.slane %v2210, 1
        %v2212 = vmax.f32 %v2210, %v2211
        %v2213 = vsel %vm376, %v2035, -inf
        %v2214 = vrot.slane %v2213, 4
        %v2215 = vmax.f32 %v2213, %v2214
        %v2216 = vrot.slane %v2215, 2
        %v2217 = vmax.f32 %v2215, %v2216
        %v2218 = vrot.slane %v2217, 1
        %v2219 = vmax.f32 %v2217, %v2218
        %v2220 = vsel %vm376, %v2040, -inf
        %v2221 = vrot.slane %v2220, 4
        %v2222 = vmax.f32 %v2220, %v2221
        %v2223 = vrot.slane %v2222, 2
        %v2224 = vmax.f32 %v2222, %v2223
        %v2225 = vrot.slane %v2224, 1
        %v2226 = vmax.f32 %v2224, %v2225
        %v2227 = vsel %vm376, %v2045, -inf
        %v2228 = vrot.slane %v2227, 4
        %v2229 = vmax.f32 %v2227, %v2228
        %v2230 = vrot.slane %v2229, 2
        %v2231 = vmax.f32 %v2229, %v2230
        %v2232 = vrot.slane %v2231, 1
        %v2233 = vmax.f32 %v2231, %v2232
        %v2234 = vsel %vm376, %v2050, -inf
        %v2235 = vrot.slane %v2234, 4
        %v2236 = vmax.f32 %v2234, %v2235
        %v2237 = vrot.slane %v2236, 2
        %v2238 = vmax.f32 %v2236, %v2237
        %v2239 = vrot.slane %v2238, 1
        %v2240 = vmax.f32 %v2238, %v2239
        %v2241 = vsel %vm376, %v2055, -inf
        %v2242 = vrot.slane %v2241, 4
        %v2243 = vmax.f32 %v2241, %v2242
        %v2244 = vrot.slane %v2243, 2
        %v2245 = vmax.f32 %v2243, %v2244
        %v2246 = vrot.slane %v2245, 1
        %v2247 = vmax.f32 %v2245, %v2246
        %v2248 = vsel %vm376, %v2060, -inf
        %v2249 = vrot.slane %v2248, 4
        %v2250 = vmax.f32 %v2248, %v2249
        %v2251 = vrot.slane %v2250, 2
        %v2252 = vmax.f32 %v2250, %v2251
        %v2253 = vrot.slane %v2252, 1
        %v2254 = vmax.f32 %v2252, %v2253
        %v2255 = vsel %vm376, %v2065, -inf
        %v2256 = vrot.slane %v2255, 4
        %v2257 = vmax.f32 %v2255, %v2256
        %v2258 = vrot.slane %v2257, 2
        %v2259 = vmax.f32 %v2257, %v2258
        %v2260 = vrot.slane %v2259, 1
        %v2261 = vmax.f32 %v2259, %v2260
        %v2262 = vsel %vm376, %v2070, -inf
        %v2263 = vrot.slane %v2262, 4
        %v2264 = vmax.f32 %v2262, %v2263
        %v2265 = vrot.slane %v2264, 2
        %v2266 = vmax.f32 %v2264, %v2265
        %v2267 = vrot.slane %v2266, 1
        %v2268 = vmax.f32 %v2266, %v2267
        %v2269 = vsel %vm376, %v2075, -inf
        %v2270 = vrot.slane %v2269, 4
        %v2271 = vmax.f32 %v2269, %v2270
        %v2272 = vrot.slane %v2271, 2
        %v2273 = vmax.f32 %v2271, %v2272
        %v2274 = vrot.slane %v2273, 1
        %v2275 = vmax.f32 %v2273, %v2274
        %v2276 = vsel %vm376, %v2080, -inf
        %v2277 = vrot.slane %v2276, 4
        %v2278 = vmax.f32 %v2276, %v2277
        %v2279 = vrot.slane %v2278, 2
        %v2280 = vmax.f32 %v2278, %v2279
        %v2281 = vrot.slane %v2280, 1
        %v2282 = vmax.f32 %v2280, %v2281
        %v2283 = vsel %vm376, %v2085, -inf
        %v2284 = vrot.slane %v2283, 4
        %v2285 = vmax.f32 %v2283, %v2284
        %v2286 = vrot.slane %v2285, 2
        %v2287 = vmax.f32 %v2285, %v2286
        %v2288 = vrot.slane %v2287, 1
        %v2289 = vmax.f32 %v2287, %v2288
        %v2290 = vsel %vm376, %v2090, -inf
        %v2291 = vrot.slane %v2290, 4
        %v2292 = vmax.f32 %v2290, %v2291
        %v2293 = vrot.slane %v2292, 2
        %v2294 = vmax.f32 %v2292, %v2293
        %v2295 = vrot.slane %v2294, 1
        %v2296 = vmax.f32 %v2294, %v2295
        %v2297 = vsel %vm376, %v2095, -inf
        %v2298 = vrot.slane %v2297, 4
        %v2299 = vmax.f32 %v2297, %v2298
        %v2300 = vrot.slane %v2299, 2
        %v2301 = vmax.f32 %v2299, %v2300
        %v2302 = vrot.slane %v2301, 1
        %v2303 = vmax.f32 %v2301, %v2302
        %v2304 = vsel %vm376, %v2100, -inf
        %v2305 = vrot.slane %v2304, 4
        %v2306 = vmax.f32 %v2304, %v2305
        %v2307 = vrot.slane %v2306, 2
        %v2308 = vmax.f32 %v2306, %v2307
        %v2309 = vrot.slane %v2308, 1
        %v2310 = vmax.f32 %v2308, %v2309
        %v2311 = vsel %vm376, %v2105, -inf
        %v2312 = vrot.slane %v2311, 4
        %v2313 = vmax.f32 %v2311, %v2312
        %v2314 = vrot.slane %v2313, 2
        %v2315 = vmax.f32 %v2313, %v2314
        %v2316 = vrot.slane %v2315, 1
        %v2317 = vmax.f32 %v2315, %v2316
        %v2318 = vsel %vm376, %v2110, -inf
        %v2319 = vrot.slane %v2318, 4
        %v2320 = vmax.f32 %v2318, %v2319
        %v2321 = vrot.slane %v2320, 2
        %v2322 = vmax.f32 %v2320, %v2321
        %v2323 = vrot.slane %v2322, 1
        %v2324 = vmax.f32 %v2322, %v2323
        %v2325 = vsel %vm376, %v2115, -inf
        %v2326 = vrot.slane %v2325, 4
        %v2327 = vmax.f32 %v2325, %v2326
        %v2328 = vrot.slane %v2327, 2
        %v2329 = vmax.f32 %v2327, %v2328
        %v2330 = vrot.slane %v2329, 1
        %v2331 = vmax.f32 %v2329, %v2330
        %v2332 = vsel %vm376, %v2120, -inf
        %v2333 = vrot.slane %v2332, 4
        %v2334 = vmax.f32 %v2332, %v2333
        %v2335 = vrot.slane %v2334, 2
        %v2336 = vmax.f32 %v2334, %v2335
        %v2337 = vrot.slane %v2336, 1
        %v2338 = vmax.f32 %v2336, %v2337
        %v2339 = vsel %vm376, %v2125, -inf
        %v2340 = vrot.slane %v2339, 4
        %v2341 = vmax.f32 %v2339, %v2340
        %v2342 = vrot.slane %v2341, 2
        %v2343 = vmax.f32 %v2341, %v2342
        %v2344 = vrot.slane %v2343, 1
        %v2345 = vmax.f32 %v2343, %v2344
        %v2346 = vsel %vm376, %v2130, -inf
        %v2347 = vrot.slane %v2346, 4
        %v2348 = vmax.f32 %v2346, %v2347
        %v2349 = vrot.slane %v2348, 2
        %v2350 = vmax.f32 %v2348, %v2349
        %v2351 = vrot.slane %v2350, 1
        %v2352 = vmax.f32 %v2350, %v2351
        %v2353 = vsel %vm376, %v2135, -inf
        %v2354 = vrot.slane %v2353, 4
        %v2355 = vmax.f32 %v2353, %v2354
        %v2356 = vrot.slane %v2355, 2
        %v2357 = vmax.f32 %v2355, %v2356
        %v2358 = vrot.slane %v2357, 1
        %v2359 = vmax.f32 %v2357, %v2358
        %v2360 = vsel %vm376, %v2140, -inf
        %v2361 = vrot.slane %v2360, 4
        %v2362 = vmax.f32 %v2360, %v2361
        %v2363 = vrot.slane %v2362, 2
        %v2364 = vmax.f32 %v2362, %v2363
        %v2365 = vrot.slane %v2364, 1
        %v2366 = vmax.f32 %v2364, %v2365
        %v2367 = vsub.f32 %v1985, %v2149
        %v2368 = vsub.f32 %v1990, %v2156
        %v2369 = vsub.f32 %v1995, %v2163
        %v2370 = vsub.f32 %v2000, %v2170
        %v2371 = vsub.f32 %v2005, %v2177
        %v2372 = vsub.f32 %v2010, %v2184
        %v2373 = vsub.f32 %v2015, %v2191
        %v2374 = vsub.f32 %v2020, %v2198
        %v2375 = vsub.f32 %v2025, %v2205
        %v2376 = vsub.f32 %v2030, %v2212
        %v2377 = vsub.f32 %v2035, %v2219
        %v2378 = vsub.f32 %v2040, %v2226
        %v2379 = vsub.f32 %v2045, %v2233
        %v2380 = vsub.f32 %v2050, %v2240
        %v2381 = vsub.f32 %v2055, %v2247
        %v2382 = vsub.f32 %v2060, %v2254
        %v2383 = vsub.f32 %v2065, %v2261
        %v2384 = vsub.f32 %v2070, %v2268
        %v2385 = vsub.f32 %v2075, %v2275
        %v2386 = vsub.f32 %v2080, %v2282
        %v2387 = vsub.f32 %v2085, %v2289
        %v2388 = vsub.f32 %v2090, %v2296
        %v2389 = vsub.f32 %v2095, %v2303
        %v2390 = vsub.f32 %v2100, %v2310
        %v2391 = vsub.f32 %v2105, %v2317
        %v2392 = vsub.f32 %v2110, %v2324
        %v2393 = vsub.f32 %v2115, %v2331
        %v2394 = vsub.f32 %v2120, %v2338
        %v2395 = vsub.f32 %v2125, %v2345
        %v2396 = vsub.f32 %v2130, %v2352
        %v2397 = vsub.f32 %v2135, %v2359
        %v2398 = vsub.f32 %v2140, %v2366
        %v2399 = vmul.f32 %v2367, 1.442695
        %v2400 = vpow.pop %v2399
        %v2401 = vmul.f32 %v2368, 1.442695
        %v2402 = vpow.pop %v2401
        %v2403 = vmul.f32 %v2369, 1.442695
        %v2404 = vpow.pop %v2403
        %v2405 = vmul.f32 %v2370, 1.442695
        %v2406 = vpow.pop %v2405
        %v2407 = vmul.f32 %v2371, 1.442695
        %v2408 = vpow.pop %v2407
        %v2409 = vmul.f32 %v2372, 1.442695
        %v2410 = vpow.pop %v2409
        %v2411 = vmul.f32 %v2373, 1.442695
        %v2412 = vpow.pop %v2411
        %v2413 = vmul.f32 %v2374, 1.442695
        %v2414 = vpow.pop %v2413
        %v2415 = vmul.f32 %v2375, 1.442695
        %v2416 = vpow.pop %v2415
        %v2417 = vmul.f32 %v2376, 1.442695
        %v2418 = vpow.pop %v2417
        %v2419 = vmul.f32 %v2377, 1.442695
        %v2420 = vpow.pop %v2419
        %v2421 = vmul.f32 %v2378, 1.442695
        %v2422 = vpow.pop %v2421
        %v2423 = vmul.f32 %v2379, 1.442695
        %v2424 = vpow.pop %v2423
        %v2425 = vmul.f32 %v2380, 1.442695
        %v2426 = vpow.pop %v2425
        %v2427 = vmul.f32 %v2381, 1.442695
        %v2428 = vpow.pop %v2427
        %v2429 = vmul.f32 %v2382, 1.442695
        %v2430 = vpow.pop %v2429
        %v2431 = vmul.f32 %v2383, 1.442695
        %v2432 = vpow.pop %v2431
        %v2433 = vmul.f32 %v2384, 1.442695
        %v2434 = vpow.pop %v2433
        %v2435 = vmul.f32 %v2385, 1.442695
        %v2436 = vpow.pop %v2435
        %v2437 = vmul.f32 %v2386, 1.442695
        %v2438 = vpow.pop %v2437
        %v2439 = vmul.f32 %v2387, 1.442695
        %v2440 = vpow.pop %v2439
        %v2441 = vmul.f32 %v2388, 1.442695
        %v2442 = vpow.pop %v2441
        %v2443 = vmul.f32 %v2389, 1.442695
        %v2444 = vpow.pop %v2443
        %v2445 = vmul.f32 %v2390, 1.442695
        %v2446 = vpow.pop %v2445
        %v2447 = vmul.f32 %v2391, 1.442695
        %v2448 = vpow.pop %v2447
        %v2449 = vmul.f32 %v2392, 1.442695
        %v2450 = vpow.pop %v2449
        %v2451 = vmul.f32 %v2393, 1.442695
        %v2452 = vpow.pop %v2451
        %v2453 = vmul.f32 %v2394, 1.442695
        %v2454 = vpow.pop %v2453
        %v2455 = vmul.f32 %v2395, 1.442695
        %v2456 = vpow.pop %v2455
        %v2457 = vmul.f32 %v2396, 1.442695
        %v2458 = vpow.pop %v2457
        %v2459 = vmul.f32 %v2397, 1.442695
        %v2460 = vpow.pop %v2459
        %v2461 = vmul.f32 %v2398, 1.442695
        %v2462 = vpow.pop %v2461
        %v2463 = vsel %vm376, %v2400, 0.0
        %v2464 = vrot.slane %v2463, 4
        %v2465 = vadd.f32 %v2463, %v2464
        %v2466 = vrot.slane %v2465, 2
        %v2467 = vadd.f32 %v2465, %v2466
        %v2468 = vrot.slane %v2467, 1
        %v2469 = vadd.f32 %v2467, %v2468
        %v2470 = vsel %vm376, %v2402, 0.0
        %v2471 = vrot.slane %v2470, 4
        %v2472 = vadd.f32 %v2470, %v2471
        %v2473 = vrot.slane %v2472, 2
        %v2474 = vadd.f32 %v2472, %v2473
        %v2475 = vrot.slane %v2474, 1
        %v2476 = vadd.f32 %v2474, %v2475
        %v2477 = vsel %vm376, %v2404, 0.0
        %v2478 = vrot.slane %v2477, 4
        %v2479 = vadd.f32 %v2477, %v2478
        %v2480 = vrot.slane %v2479, 2
        %v2481 = vadd.f32 %v2479, %v2480
        %v2482 = vrot.slane %v2481, 1
        %v2483 = vadd.f32 %v2481, %v2482
        %v2484 = vsel %vm376, %v2406, 0.0
        %v2485 = vrot.slane %v2484, 4
        %v2486 = vadd.f32 %v2484, %v2485
        %v2487 = vrot.slane %v2486, 2
        %v2488 = vadd.f32 %v2486, %v2487
        %v2489 = vrot.slane %v2488, 1
        %v2490 = vadd.f32 %v2488, %v2489
        %v2491 = vsel %vm376, %v2408, 0.0
        %v2492 = vrot.slane %v2491, 4
        %v2493 = vadd.f32 %v2491, %v2492
        %v2494 = vrot.slane %v2493, 2
        %v2495 = vadd.f32 %v2493, %v2494
        %v2496 = vrot.slane %v2495, 1
        %v2497 = vadd.f32 %v2495, %v2496
        %v2498 = vsel %vm376, %v2410, 0.0
        %v2499 = vrot.slane %v2498, 4
        %v2500 = vadd.f32 %v2498, %v2499
        %v2501 = vrot.slane %v2500, 2
        %v2502 = vadd.f32 %v2500, %v2501
        %v2503 = vrot.slane %v2502, 1
        %v2504 = vadd.f32 %v2502, %v2503
        %v2505 = vsel %vm376, %v2412, 0.0
        %v2506 = vrot.slane %v2505, 4
        %v2507 = vadd.f32 %v2505, %v2506
        %v2508 = vrot.slane %v2507, 2
        %v2509 = vadd.f32 %v2507, %v2508
        %v2510 = vrot.slane %v2509, 1
        %v2511 = vadd.f32 %v2509, %v2510
        %v2512 = vsel %vm376, %v2414, 0.0
        %v2513 = vrot.slane %v2512, 4
        %v2514 = vadd.f32 %v2512, %v2513
        %v2515 = vrot.slane %v2514, 2
        %v2516 = vadd.f32 %v2514, %v2515
        %v2517 = vrot.slane %v2516, 1
        %v2518 = vadd.f32 %v2516, %v2517
        %v2519 = vsel %vm376, %v2416, 0.0
        %v2520 = vrot.slane %v2519, 4
        %v2521 = vadd.f32 %v2519, %v2520
        %v2522 = vrot.slane %v2521, 2
        %v2523 = vadd.f32 %v2521, %v2522
        %v2524 = vrot.slane %v2523, 1
        %v2525 = vadd.f32 %v2523, %v2524
        %v2526 = vsel %vm376, %v2418, 0.0
        %v2527 = vrot.slane %v2526, 4
        %v2528 = vadd.f32 %v2526, %v2527
        %v2529 = vrot.slane %v2528, 2
        %v2530 = vadd.f32 %v2528, %v2529
        %v2531 = vrot.slane %v2530, 1
        %v2532 = vadd.f32 %v2530, %v2531
        %v2533 = vsel %vm376, %v2420, 0.0
        %v2534 = vrot.slane %v2533, 4
        %v2535 = vadd.f32 %v2533, %v2534
        %v2536 = vrot.slane %v2535, 2
        %v2537 = vadd.f32 %v2535, %v2536
        %v2538 = vrot.slane %v2537, 1
        %v2539 = vadd.f32 %v2537, %v2538
        %v2540 = vsel %vm376, %v2422, 0.0
        %v2541 = vrot.slane %v2540, 4
        %v2542 = vadd.f32 %v2540, %v2541
        %v2543 = vrot.slane %v2542, 2
        %v2544 = vadd.f32 %v2542, %v2543
        %v2545 = vrot.slane %v2544, 1
        %v2546 = vadd.f32 %v2544, %v2545
        %v2547 = vsel %vm376, %v2424, 0.0
        %v2548 = vrot.slane %v2547, 4
        %v2549 = vadd.f32 %v2547, %v2548
        %v2550 = vrot.slane %v2549, 2
        %v2551 = vadd.f32 %v2549, %v2550
        %v2552 = vrot.slane %v2551, 1
        %v2553 = vadd.f32 %v2551, %v2552
        %v2554 = vsel %vm376, %v2426, 0.0
        %v2555 = vrot.slane %v2554, 4
        %v2556 = vadd.f32 %v2554, %v2555
        %v2557 = vrot.slane %v2556, 2
        %v2558 = vadd.f32 %v2556, %v2557
        %v2559 = vrot.slane %v2558, 1
        %v2560 = vadd.f32 %v2558, %v2559
        %v2561 = vsel %vm376, %v2428, 0.0
        %v2562 = vrot.slane %v2561, 4
        %v2563 = vadd.f32 %v2561, %v2562
        %v2564 = vrot.slane %v2563, 2
        %v2565 = vadd.f32 %v2563, %v2564
        %v2566 = vrot.slane %v2565, 1
        %v2567 = vadd.f32 %v2565, %v2566
        %v2568 = vsel %vm376, %v2430, 0.0
        %v2569 = vrot.slane %v2568, 4
        %v2570 = vadd.f32 %v2568, %v2569
        %v2571 = vrot.slane %v2570, 2
        %v2572 = vadd.f32 %v2570, %v2571
        %v2573 = vrot.slane %v2572, 1
        %v2574 = vadd.f32 %v2572, %v2573
        %v2575 = vsel %vm376, %v2432, 0.0
        %v2576 = vrot.slane %v2575, 4
        %v2577 = vadd.f32 %v2575, %v2576
        %v2578 = vrot.slane %v2577, 2
        %v2579 = vadd.f32 %v2577, %v2578
        %v2580 = vrot.slane %v2579, 1
        %v2581 = vadd.f32 %v2579, %v2580
        %v2582 = vsel %vm376, %v2434, 0.0
        %v2583 = vrot.slane %v2582, 4
        %v2584 = vadd.f32 %v2582, %v2583
        %v2585 = vrot.slane %v2584, 2
        %v2586 = vadd.f32 %v2584, %v2585
        %v2587 = vrot.slane %v2586, 1
        %v2588 = vadd.f32 %v2586, %v2587
        %v2589 = vsel %vm376, %v2436, 0.0
        %v2590 = vrot.slane %v2589, 4
        %v2591 = vadd.f32 %v2589, %v2590
        %v2592 = vrot.slane %v2591, 2
        %v2593 = vadd.f32 %v2591, %v2592
        %v2594 = vrot.slane %v2593, 1
        %v2595 = vadd.f32 %v2593, %v2594
        %v2596 = vsel %vm376, %v2438, 0.0
        %v2597 = vrot.slane %v2596, 4
        %v2598 = vadd.f32 %v2596, %v2597
        %v2599 = vrot.slane %v2598, 2
        %v2600 = vadd.f32 %v2598, %v2599
        %v2601 = vrot.slane %v2600, 1
        %v2602 = vadd.f32 %v2600, %v2601
        %v2603 = vsel %vm376, %v2440, 0.0
        %v2604 = vrot.slane %v2603, 4
        %v2605 = vadd.f32 %v2603, %v2604
        %v2606 = vrot.slane %v2605, 2
        %v2607 = vadd.f32 %v2605, %v2606
        %v2608 = vrot.slane %v2607, 1
        %v2609 = vadd.f32 %v2607, %v2608
        %v2610 = vsel %vm376, %v2442, 0.0
        %v2611 = vrot.slane %v2610, 4
        %v2612 = vadd.f32 %v2610, %v2611
        %v2613 = vrot.slane %v2612, 2
        %v2614 = vadd.f32 %v2612, %v2613
        %v2615 = vrot.slane %v2614, 1
        %v2616 = vadd.f32 %v2614, %v2615
        %v2617 = vsel %vm376, %v2444, 0.0
        %v2618 = vrot.slane %v2617, 4
        %v2619 = vadd.f32 %v2617, %v2618
        %v2620 = vrot.slane %v2619, 2
        %v2621 = vadd.f32 %v2619, %v2620
        %v2622 = vrot.slane %v2621, 1
        %v2623 = vadd.f32 %v2621, %v2622
        %v2624 = vsel %vm376, %v2446, 0.0
        %v2625 = vrot.slane %v2624, 4
        %v2626 = vadd.f32 %v2624, %v2625
        %v2627 = vrot.slane %v2626, 2
        %v2628 = vadd.f32 %v2626, %v2627
        %v2629 = vrot.slane %v2628, 1
        %v2630 = vadd.f32 %v2628, %v2629
        %v2631 = vsel %vm376, %v2448, 0.0
        %v2632 = vrot.slane %v2631, 4
        %v2633 = vadd.f32 %v2631, %v2632
        %v2634 = vrot.slane %v2633, 2
        %v2635 = vadd.f32 %v2633, %v2634
        %v2636 = vrot.slane %v2635, 1
        %v2637 = vadd.f32 %v2635, %v2636
        %v2638 = vsel %vm376, %v2450, 0.0
        %v2639 = vrot.slane %v2638, 4
        %v2640 = vadd.f32 %v2638, %v2639
        %v2641 = vrot.slane %v2640, 2
        %v2642 = vadd.f32 %v2640, %v2641
        %v2643 = vrot.slane %v2642, 1
        %v2644 = vadd.f32 %v2642, %v2643
        %v2645 = vsel %vm376, %v2452, 0.0
        %v2646 = vrot.slane %v2645, 4
        %v2647 = vadd.f32 %v2645, %v2646
        %v2648 = vrot.slane %v2647, 2
        %v2649 = vadd.f32 %v2647, %v2648
        %v2650 = vrot.slane %v2649, 1
        %v2651 = vadd.f32 %v2649, %v2650
        %v2652 = vsel %vm376, %v2454, 0.0
        %v2653 = vrot.slane %v2652, 4
        %v2654 = vadd.f32 %v2652, %v2653
        %v2655 = vrot.slane %v2654, 2
        %v2656 = vadd.f32 %v2654, %v2655
        %v2657 = vrot.slane %v2656, 1
        %v2658 = vadd.f32 %v2656, %v2657
        %v2659 = vsel %vm376, %v2456, 0.0
        %v2660 = vrot.slane %v2659, 4
        %v2661 = vadd.f32 %v2659, %v2660
        %v2662 = vrot.slane %v2661, 2
        %v2663 = vadd.f32 %v2661, %v2662
        %v2664 = vrot.slane %v2663, 1
        %v2665 = vadd.f32 %v2663, %v2664
        %v2666 = vsel %vm376, %v2458, 0.0
        %v2667 = vrot.slane %v2666, 4
        %v2668 = vadd.f32 %v2666, %v2667
        %v2669 = vrot.slane %v2668, 2
        %v2670 = vadd.f32 %v2668, %v2669
        %v2671 = vrot.slane %v2670, 1
        %v2672 = vadd.f32 %v2670, %v2671
        %v2673 = vsel %vm376, %v2460, 0.0
        %v2674 = vrot.slane %v2673, 4
        %v2675 = vadd.f32 %v2673, %v2674
        %v2676 = vrot.slane %v2675, 2
        %v2677 = vadd.f32 %v2675, %v2676
        %v2678 = vrot.slane %v2677, 1
        %v2679 = vadd.f32 %v2677, %v2678
        %v2680 = vsel %vm376, %v2462, 0.0
        %v2681 = vrot.slane %v2680, 4
        %v2682 = vadd.f32 %v2680, %v2681
        %v2683 = vrot.slane %v2682, 2
        %v2684 = vadd.f32 %v2682, %v2683
        %v2685 = vrot.slane %v2684, 1
        %v2686 = vadd.f32 %v2684, %v2685
        %v2687 = vrcp.pop %v2469
        %v2688 = vmul.f32 %v2400, %v2687
        %v2689 = vrcp.pop %v2476
        %v2690 = vmul.f32 %v2402, %v2689
        %v2691 = vrcp.pop %v2483
        %v2692 = vmul.f32 %v2404, %v2691
        %v2693 = vrcp.pop %v2490
        %v2694 = vmul.f32 %v2406, %v2693
        %v2695 = vrcp.pop %v2497
        %v2696 = vmul.f32 %v2408, %v2695
        %v2697 = vrcp.pop %v2504
        %v2698 = vmul.f32 %v2410, %v2697
        %v2699 = vrcp.pop %v2511
        %v2700 = vmul.f32 %v2412, %v2699
        %v2701 = vrcp.pop %v2518
        %v2702 = vmul.f32 %v2414, %v2701
        %v2703 = vrcp.pop %v2525
        %v2704 = vmul.f32 %v2416, %v2703
        %v2705 = vrcp.pop %v2532
        %v2706 = vmul.f32 %v2418, %v2705
        %v2707 = vrcp.pop %v2539
        %v2708 = vmul.f32 %v2420, %v2707
        %v2709 = vrcp.pop %v2546
        %v2710 = vmul.f32 %v2422, %v2709
        %v2711 = vrcp.pop %v2553
        %v2712 = vmul.f32 %v2424, %v2711
        %v2713 = vrcp.pop %v2560
        %v2714 = vmul.f32 %v2426, %v2713
        %v2715 = vrcp.pop %v2567
        %v2716 = vmul.f32 %v2428, %v2715
        %v2717 = vrcp.pop %v2574
        %v2718 = vmul.f32 %v2430, %v2717
        %v2719 = vrcp.pop %v2581
        %v2720 = vmul.f32 %v2432, %v2719
        %v2721 = vrcp.pop %v2588
        %v2722 = vmul.f32 %v2434, %v2721
        %v2723 = vrcp.pop %v2595
        %v2724 = vmul.f32 %v2436, %v2723
        %v2725 = vrcp.pop %v2602
        %v2726 = vmul.f32 %v2438, %v2725
        %v2727 = vrcp.pop %v2609
        %v2728 = vmul.f32 %v2440, %v2727
        %v2729 = vrcp.pop %v2616
        %v2730 = vmul.f32 %v2442, %v2729
        %v2731 = vrcp.pop %v2623
        %v2732 = vmul.f32 %v2444, %v2731
        %v2733 = vrcp.pop %v2630
        %v2734 = vmul.f32 %v2446, %v2733
        %v2735 = vrcp.pop %v2637
        %v2736 = vmul.f32 %v2448, %v2735
        %v2737 = vrcp.pop %v2644
        %v2738 = vmul.f32 %v2450, %v2737
        %v2739 = vrcp.pop %v2651
        %v2740 = vmul.f32 %v2452, %v2739
        %v2741 = vrcp.pop %v2658
        %v2742 = vmul.f32 %v2454, %v2741
        %v2743 = vrcp.pop %v2665
        %v2744 = vmul.f32 %v2456, %v2743
        %v2745 = vrcp.pop %v2672
        %v2746 = vmul.f32 %v2458, %v2745
        %v2747 = vrcp.pop %v2679
        %v2748 = vmul.f32 %v2460, %v2747
        %v2749 = vrcp.pop %v2686
        %v2750 = vmul.f32 %v2462, %v2749
        %v2751 = vmul.f32 %v2688, %v1417
        %v2752 = vmul.f32 %v2690, %v1418
        %v2753 = vmul.f32 %v2692, %v1419
        %v2754 = vmul.f32 %v2694, %v1420
        %v2755 = vmul.f32 %v2696, %v1421
        %v2756 = vmul.f32 %v2698, %v1422
        %v2757 = vmul.f32 %v2700, %v1423
        %v2758 = vmul.f32 %v2702, %v1424
        %v2759 = vmul.f32 %v2704, %v1425
        %v2760 = vmul.f32 %v2706, %v1426
        %v2761 = vmul.f32 %v2708, %v1427
        %v2762 = vmul.f32 %v2710, %v1428
        %v2763 = vmul.f32 %v2712, %v1429
        %v2764 = vmul.f32 %v2714, %v1430
        %v2765 = vmul.f32 %v2716, %v1431
        %v2766 = vmul.f32 %v2718, %v1432
        %v2767 = vmul.f32 %v2720, %v1433
        %v2768 = vmul.f32 %v2722, %v1434
        %v2769 = vmul.f32 %v2724, %v1435
        %v2770 = vmul.f32 %v2726, %v1436
        %v2771 = vmul.f32 %v2728, %v1437
        %v2772 = vmul.f32 %v2730, %v1438
        %v2773 = vmul.f32 %v2732, %v1439
        %v2774 = vmul.f32 %v2734, %v1440
        %v2775 = vmul.f32 %v2736, %v1441
        %v2776 = vmul.f32 %v2738, %v1442
        %v2777 = vmul.f32 %v2740, %v1443
        %v2778 = vmul.f32 %v2742, %v1444
        %v2779 = vmul.f32 %v2744, %v1445
        %v2780 = vmul.f32 %v2746, %v1446
        %v2781 = vmul.f32 %v2748, %v1447
        %v2782 = vmul.f32 %v2750, %v1448
        %v2783 = vsel %vm376, %v2751, 0.0
        %v2784 = vrot.slane %v2783, 4
        %v2785 = vadd.f32 %v2783, %v2784
        %v2786 = vrot.slane %v2785, 2
        %v2787 = vadd.f32 %v2785, %v2786
        %v2788 = vrot.slane %v2787, 1
        %v2789 = vadd.f32 %v2787, %v2788
        %v2790 = vsel %vm376, %v2752, 0.0
        %v2791 = vrot.slane %v2790, 4
        %v2792 = vadd.f32 %v2790, %v2791
        %v2793 = vrot.slane %v2792, 2
        %v2794 = vadd.f32 %v2792, %v2793
        %v2795 = vrot.slane %v2794, 1
        %v2796 = vadd.f32 %v2794, %v2795
        %v2797 = vsel %vm376, %v2753, 0.0
        %v2798 = vrot.slane %v2797, 4
        %v2799 = vadd.f32 %v2797, %v2798
        %v2800 = vrot.slane %v2799, 2
        %v2801 = vadd.f32 %v2799, %v2800
        %v2802 = vrot.slane %v2801, 1
        %v2803 = vadd.f32 %v2801, %v2802
        %v2804 = vsel %vm376, %v2754, 0.0
        %v2805 = vrot.slane %v2804, 4
        %v2806 = vadd.f32 %v2804, %v2805
        %v2807 = vrot.slane %v2806, 2
        %v2808 = vadd.f32 %v2806, %v2807
        %v2809 = vrot.slane %v2808, 1
        %v2810 = vadd.f32 %v2808, %v2809
        %v2811 = vsel %vm376, %v2755, 0.0
        %v2812 = vrot.slane %v2811, 4
        %v2813 = vadd.f32 %v2811, %v2812
        %v2814 = vrot.slane %v2813, 2
        %v2815 = vadd.f32 %v2813, %v2814
        %v2816 = vrot.slane %v2815, 1
        %v2817 = vadd.f32 %v2815, %v2816
        %v2818 = vsel %vm376, %v2756, 0.0
        %v2819 = vrot.slane %v2818, 4
        %v2820 = vadd.f32 %v2818, %v2819
        %v2821 = vrot.slane %v2820, 2
        %v2822 = vadd.f32 %v2820, %v2821
        %v2823 = vrot.slane %v2822, 1
        %v2824 = vadd.f32 %v2822, %v2823
        %v2825 = vsel %vm376, %v2757, 0.0
        %v2826 = vrot.slane %v2825, 4
        %v2827 = vadd.f32 %v2825, %v2826
        %v2828 = vrot.slane %v2827, 2
        %v2829 = vadd.f32 %v2827, %v2828
        %v2830 = vrot.slane %v2829, 1
        %v2831 = vadd.f32 %v2829, %v2830
        %v2832 = vsel %vm376, %v2758, 0.0
        %v2833 = vrot.slane %v2832, 4
        %v2834 = vadd.f32 %v2832, %v2833
        %v2835 = vrot.slane %v2834, 2
        %v2836 = vadd.f32 %v2834, %v2835
        %v2837 = vrot.slane %v2836, 1
        %v2838 = vadd.f32 %v2836, %v2837
        %v2839 = vsel %vm376, %v2759, 0.0
        %v2840 = vrot.slane %v2839, 4
        %v2841 = vadd.f32 %v2839, %v2840
        %v2842 = vrot.slane %v2841, 2
        %v2843 = vadd.f32 %v2841, %v2842
        %v2844 = vrot.slane %v2843, 1
        %v2845 = vadd.f32 %v2843, %v2844
        %v2846 = vsel %vm376, %v2760, 0.0
        %v2847 = vrot.slane %v2846, 4
        %v2848 = vadd.f32 %v2846, %v2847
        %v2849 = vrot.slane %v2848, 2
        %v2850 = vadd.f32 %v2848, %v2849
        %v2851 = vrot.slane %v2850, 1
        %v2852 = vadd.f32 %v2850, %v2851
        %v2853 = vsel %vm376, %v2761, 0.0
        %v2854 = vrot.slane %v2853, 4
        %v2855 = vadd.f32 %v2853, %v2854
        %v2856 = vrot.slane %v2855, 2
        %v2857 = vadd.f32 %v2855, %v2856
        %v2858 = vrot.slane %v2857, 1
        %v2859 = vadd.f32 %v2857, %v2858
        %v2860 = vsel %vm376, %v2762, 0.0
        %v2861 = vrot.slane %v2860, 4
        %v2862 = vadd.f32 %v2860, %v2861
        %v2863 = vrot.slane %v2862, 2
        %v2864 = vadd.f32 %v2862, %v2863
        %v2865 = vrot.slane %v2864, 1
        %v2866 = vadd.f32 %v2864, %v2865
        %v2867 = vsel %vm376, %v2763, 0.0
        %v2868 = vrot.slane %v2867, 4
        %v2869 = vadd.f32 %v2867, %v2868
        %v2870 = vrot.slane %v2869, 2
        %v2871 = vadd.f32 %v2869, %v2870
        %v2872 = vrot.slane %v2871, 1
        %v2873 = vadd.f32 %v2871, %v2872
        %v2874 = vsel %vm376, %v2764, 0.0
        %v2875 = vrot.slane %v2874, 4
        %v2876 = vadd.f32 %v2874, %v2875
        %v2877 = vrot.slane %v2876, 2
        %v2878 = vadd.f32 %v2876, %v2877
        %v2879 = vrot.slane %v2878, 1
        %v2880 = vadd.f32 %v2878, %v2879
        %v2881 = vsel %vm376, %v2765, 0.0
        %v2882 = vrot.slane %v2881, 4
        %v2883 = vadd.f32 %v2881, %v2882
        %v2884 = vrot.slane %v2883, 2
        %v2885 = vadd.f32 %v2883, %v2884
        %v2886 = vrot.slane %v2885, 1
        %v2887 = vadd.f32 %v2885, %v2886
        %v2888 = vsel %vm376, %v2766, 0.0
        %v2889 = vrot.slane %v2888, 4
        %v2890 = vadd.f32 %v2888, %v2889
        %v2891 = vrot.slane %v2890, 2
        %v2892 = vadd.f32 %v2890, %v2891
        %v2893 = vrot.slane %v2892, 1
        %v2894 = vadd.f32 %v2892, %v2893
        %v2895 = vsel %vm376, %v2767, 0.0
        %v2896 = vrot.slane %v2895, 4
        %v2897 = vadd.f32 %v2895, %v2896
        %v2898 = vrot.slane %v2897, 2
        %v2899 = vadd.f32 %v2897, %v2898
        %v2900 = vrot.slane %v2899, 1
        %v2901 = vadd.f32 %v2899, %v2900
        %v2902 = vsel %vm376, %v2768, 0.0
        %v2903 = vrot.slane %v2902, 4
        %v2904 = vadd.f32 %v2902, %v2903
        %v2905 = vrot.slane %v2904, 2
        %v2906 = vadd.f32 %v2904, %v2905
        %v2907 = vrot.slane %v2906, 1
        %v2908 = vadd.f32 %v2906, %v2907
        %v2909 = vsel %vm376, %v2769, 0.0
        %v2910 = vrot.slane %v2909, 4
        %v2911 = vadd.f32 %v2909, %v2910
        %v2912 = vrot.slane %v2911, 2
        %v2913 = vadd.f32 %v2911, %v2912
        %v2914 = vrot.slane %v2913, 1
        %v2915 = vadd.f32 %v2913, %v2914
        %v2916 = vsel %vm376, %v2770, 0.0
        %v2917 = vrot.slane %v2916, 4
        %v2918 = vadd.f32 %v2916, %v2917
        %v2919 = vrot.slane %v2918, 2
        %v2920 = vadd.f32 %v2918, %v2919
        %v2921 = vrot.slane %v2920, 1
        %v2922 = vadd.f32 %v2920, %v2921
        %v2923 = vsel %vm376, %v2771, 0.0
        %v2924 = vrot.slane %v2923, 4
        %v2925 = vadd.f32 %v2923, %v2924
        %v2926 = vrot.slane %v2925, 2
        %v2927 = vadd.f32 %v2925, %v2926
        %v2928 = vrot.slane %v2927, 1
        %v2929 = vadd.f32 %v2927, %v2928
        %v2930 = vsel %vm376, %v2772, 0.0
        %v2931 = vrot.slane %v2930, 4
        %v2932 = vadd.f32 %v2930, %v2931
        %v2933 = vrot.slane %v2932, 2
        %v2934 = vadd.f32 %v2932, %v2933
        %v2935 = vrot.slane %v2934, 1
        %v2936 = vadd.f32 %v2934, %v2935
        %v2937 = vsel %vm376, %v2773, 0.0
        %v2938 = vrot.slane %v2937, 4
        %v2939 = vadd.f32 %v2937, %v2938
        %v2940 = vrot.slane %v2939, 2
        %v2941 = vadd.f32 %v2939, %v2940
        %v2942 = vrot.slane %v2941, 1
        %v2943 = vadd.f32 %v2941, %v2942
        %v2944 = vsel %vm376, %v2774, 0.0
        %v2945 = vrot.slane %v2944, 4
        %v2946 = vadd.f32 %v2944, %v2945
        %v2947 = vrot.slane %v2946, 2
        %v2948 = vadd.f32 %v2946, %v2947
        %v2949 = vrot.slane %v2948, 1
        %v2950 = vadd.f32 %v2948, %v2949
        %v2951 = vsel %vm376, %v2775, 0.0
        %v2952 = vrot.slane %v2951, 4
        %v2953 = vadd.f32 %v2951, %v2952
        %v2954 = vrot.slane %v2953, 2
        %v2955 = vadd.f32 %v2953, %v2954
        %v2956 = vrot.slane %v2955, 1
        %v2957 = vadd.f32 %v2955, %v2956
        %v2958 = vsel %vm376, %v2776, 0.0
        %v2959 = vrot.slane %v2958, 4
        %v2960 = vadd.f32 %v2958, %v2959
        %v2961 = vrot.slane %v2960, 2
        %v2962 = vadd.f32 %v2960, %v2961
        %v2963 = vrot.slane %v2962, 1
        %v2964 = vadd.f32 %v2962, %v2963
        %v2965 = vsel %vm376, %v2777, 0.0
        %v2966 = vrot.slane %v2965, 4
        %v2967 = vadd.f32 %v2965, %v2966
        %v2968 = vrot.slane %v2967, 2
        %v2969 = vadd.f32 %v2967, %v2968
        %v2970 = vrot.slane %v2969, 1
        %v2971 = vadd.f32 %v2969, %v2970
        %v2972 = vsel %vm376, %v2778, 0.0
        %v2973 = vrot.slane %v2972, 4
        %v2974 = vadd.f32 %v2972, %v2973
        %v2975 = vrot.slane %v2974, 2
        %v2976 = vadd.f32 %v2974, %v2975
        %v2977 = vrot.slane %v2976, 1
        %v2978 = vadd.f32 %v2976, %v2977
        %v2979 = vsel %vm376, %v2779, 0.0
        %v2980 = vrot.slane %v2979, 4
        %v2981 = vadd.f32 %v2979, %v2980
        %v2982 = vrot.slane %v2981, 2
        %v2983 = vadd.f32 %v2981, %v2982
        %v2984 = vrot.slane %v2983, 1
        %v2985 = vadd.f32 %v2983, %v2984
        %v2986 = vsel %vm376, %v2780, 0.0
        %v2987 = vrot.slane %v2986, 4
        %v2988 = vadd.f32 %v2986, %v2987
        %v2989 = vrot.slane %v2988, 2
        %v2990 = vadd.f32 %v2988, %v2989
        %v2991 = vrot.slane %v2990, 1
        %v2992 = vadd.f32 %v2990, %v2991
        %v2993 = vsel %vm376, %v2781, 0.0
        %v2994 = vrot.slane %v2993, 4
        %v2995 = vadd.f32 %v2993, %v2994
        %v2996 = vrot.slane %v2995, 2
        %v2997 = vadd.f32 %v2995, %v2996
        %v2998 = vrot.slane %v2997, 1
        %v2999 = vadd.f32 %v2997, %v2998
        %v3000 = vsel %vm376, %v2782, 0.0
        %v3001 = vrot.slane %v3000, 4
        %v3002 = vadd.f32 %v3000, %v3001
        %v3003 = vrot.slane %v3002, 2
        %v3004 = vadd.f32 %v3002, %v3003
        %v3005 = vrot.slane %v3004, 1
        %v3006 = vadd.f32 %v3004, %v3005
        %vm3015 = vcmask 1041409
        %v3016 = vsel %vm3015, %v2817, %v2789
        %vm3017 = vcmask 1042434
        %v3018 = vsel %vm3017, %v2845, %v3016
        %vm3019 = vcmask 1043459
        %v3020 = vsel %vm3019, %v2873, %v3018
        %vm3021 = vcmask 1044484
        %v3022 = vsel %vm3021, %v2901, %v3020
        %vm3023 = vcmask 1045509
        %v3024 = vsel %vm3023, %v2929, %v3022
        %vm3025 = vcmask 1046534
        %v3026 = vsel %vm3025, %v2957, %v3024
        %vm3027 = vcmask 1047559
        %v3028 = vsel %vm3027, %v2985, %v3026
        %v3038 = vsel %vm3015, %v2824, %v2796
        %v3039 = vsel %vm3017, %v2852, %v3038
        %v3040 = vsel %vm3019, %v2880, %v3039
        %v3041 = vsel %vm3021, %v2908, %v3040
        %v3042 = vsel %vm3023, %v2936, %v3041
        %v3043 = vsel %vm3025, %v2964, %v3042
        %v3044 = vsel %vm3027, %v2992, %v3043
        %3045 = vrot.lane.b32.xlu0 %v3044, 32
        %v3046 = vpop.permute.xlu0 %3045
        %v3056 = vsel %vm3015, %v2831, %v2803
        %v3057 = vsel %vm3017, %v2859, %v3056
        %v3058 = vsel %vm3019, %v2887, %v3057
        %v3059 = vsel %vm3021, %v2915, %v3058
        %v3060 = vsel %vm3023, %v2943, %v3059
        %v3061 = vsel %vm3025, %v2971, %v3060
        %v3062 = vsel %vm3027, %v2999, %v3061
        %3063 = vrot.lane.b32.xlu0 %v3062, 64
        %v3064 = vpop.permute.xlu0 %3063
        %v3074 = vsel %vm3015, %v2838, %v2810
        %v3075 = vsel %vm3017, %v2866, %v3074
        %v3076 = vsel %vm3019, %v2894, %v3075
        %v3077 = vsel %vm3021, %v2922, %v3076
        %v3078 = vsel %vm3023, %v2950, %v3077
        %v3079 = vsel %vm3025, %v2978, %v3078
        %v3080 = vsel %vm3027, %v3006, %v3079
        %3081 = vrot.lane.b32.xlu0 %v3080, 96
        %v3082 = vpop.permute.xlu0 %3081
        %v3084 = vsel %vm376, %v3028, %v3046
        %vm3085 = vcmask 523264
        %v3086 = vsel %vm3085, %v3084, %v3064
        %vm3087 = vcmask 785408
        %v3088 = vsel %vm3087, %v3086, %v3082
        %3089 = vst [vmem:[%s326] sm:$0xff] %v3088
        %s3090 = sand.u32 %s225, 1
        %s3091 = scalar_lea.sflag [#allocation3], %s3090
        %s3092 = sand.u32 %s225, 1
        %s3093 = smul.addr %s3092, 8
        %s3094 = scalar_lea.vmem [#allocation2], %s3093
        // Predicated region
        $region57: #{tpu_custom_call.1} parent=55 // pred_check
          %p3095 = pneg %p235
        $region58: #{tpu_custom_call.1} parent=55 // pred_check_branch
          %3097 = sbr.rel (%p3095) target = $region60
        $region59: #{tpu_custom_call.1} parent=55 // pred_region
          %s3099 = ssub.s32 128, 128
          %3100 = vsyncadd %s3091, %s3099
          %s3101 = smul.addr %s23, 128
          %s3102 = scalar_lea.hbm %s9, %s3101
          %s3104 = sshll.u32 %s3094, 4
          %s3105 = int_to_ptr.vmem [resolvable:$true] %s3104
          %3107 = dma.vmem_to_hbm [thread:$0]  %s3105, 128, %s3102, %s3091
        $region60: #{tpu_custom_call.1} parent=55 // pred_fallthru
          _
      $region56: #{tpu_custom_call.1} parent=5 // pred_fallthru
        _
      %p3108 = scmp.le.s32.totalorder 2, %s18
      // Predicated region
      $region61: #{tpu_custom_call.1} parent=5 // pred_check
        %p3109 = pneg %p3108
      $region62: #{tpu_custom_call.1} parent=5 // pred_check_branch
        %3111 = sbr.rel (%p3109) target = $region64
      $region63: #{tpu_custom_call.1} parent=5 // pred_region
        %s3112 = ssub.s32 %s18, 2
        // Predicated region
        $region65: #{tpu_custom_call.1} parent=63 // pred_check
          %p3113 = pneg %p241
        $region66: #{tpu_custom_call.1} parent=63 // pred_check_branch
          %3115 = sbr.rel (%p3113) target = $region68
        $region67: #{tpu_custom_call.1} parent=63 // pred_region
          %s3116 = sand.u32 %s226, 1
          %s3117 = scalar_lea.sflag [#allocation3], %s3116
          %s3118 = sand.u32 %s226, 1
          %s3119 = smul.addr %s3118, 8
          %s3120 = scalar_lea.vmem [#allocation2], %s3119
          %3121 = dma.done %s3117, 128
        $region68: #{tpu_custom_call.1} parent=63 // pred_fallthru
          _
      $region64: #{tpu_custom_call.1} parent=5 // pred_fallthru
        _
    $region6: #{tpu_custom_call.1} parent=1 // loop_footer
      %s22 = sadd.s32 1, %s18
    $region7: #{tpu_custom_call.1} parent=1 // loop_footer_branch
      %17 = sbr.rel target = $region3
    $region8: #{tpu_custom_call.1} parent=1 // loop_exit
      _
    %3122 = vsyncpa [#allocation3], 1
    %s3123 = scalar_lea.sflag [#allocation3], 1
    %3124 = vsyncpa %s3123, 1

</llo_original>
